<compile_context>
chip_gen: v7x
topology: tpu7x:2x2x1
jax: 0.10.0
libtpu: 0.0.40
codegen_flags: <defaults>
</compile_context>

<pallas_src>
import jax
import jax.numpy as jnp
from jax.experimental import pallas as pl
from jax.experimental.pallas import tpu as pltpu

_EPS = 1e-5
_SUB = 8  # sublane quantum -> channel padding


def _round_up(x, m):
    return (x + m - 1) // m * m


# ------------------------------- fused kernel --------------------------------

def _make_rblock_kernel(Cp, Coutp, S, W):
    # Tap offsets in the flattened (n, h, w) spatial axis; tap order t = dy*3 + dx matches
    # both the mask stacking order and the weight reshape on the host.
    offs = [(dy - 1) * W + (dx - 1) for dy in range(3) for dx in range(3)]

    def kernel(x_ref, masks_ref,
               g1, be1, w1, b1, g2, be2, w2, b2,
               g3, be3, w3, b3, g4, be4, w4, b4,
               w5, b5,
               out_ref):

        def bn_relu(x, g_ref, be_ref):
            # BatchNorm2d (training mode: per-channel batch stats, biased variance) + ReLU,
            # folded to a single FMA per element.
            mean = jnp.mean(x, axis=1, keepdims=True)
            var = jnp.mean((x - mean) ** 2, axis=1, keepdims=True)
            scale = g_ref[...] * jax.lax.rsqrt(var + _EPS)
            shift = be_ref[...] - mean * scale
            return jnp.maximum(x * scale + shift, 0.0)

        def conv3x3(x, w_ref, b_ref):
            # im2col via XLU lane rolls + border masks; one MXU matmul for all 9 taps.
            taps = []
            for t, off in enumerate(offs):
                if off == 0:                       # center tap: no shift, mask is all-ones
                    taps.append(x)
                else:
                    shifted = pltpu.roll(x, shift=(-off) % S, axis=1)
                    taps.append(shifted * masks_ref[t])
            patches = jnp.concatenate(taps, axis=0)          # (9*Cp, S), tile-aligned stack
            return jnp.dot(w_ref[...], patches,
                           preferred_element_type=jnp.float32) + b_ref[...]

        x = x_ref[...].astype(jnp.float32)

        # RSubBlock 1: bn1 -> relu -> conv1 -> bn2 -> relu -> conv2, + residual
        r = x
        h = conv3x3(bn_relu(x, g1, be1), w1, b1)
        x = conv3x3(bn_relu(h, g2, be2), w2, b2) + r

        # RSubBlock 2
        r = x
        h = conv3x3(bn_relu(x, g3, be3), w3, b3)
        x = conv3x3(bn_relu(h, g4, be4), w4, b4) + r

        # Output conv (no BN/ReLU), lane-dense (Cout_p, S) store.
        out_ref[...] = conv3x3(x, w5, b5).astype(out_ref.dtype)

    return kernel


# ------------------------------ host-side helpers -----------------------------

def _pad_to(a, axis, size):
    pad = [(0, 0)] * a.ndim
    pad[axis] = (0, size - a.shape[axis])
    return jnp.pad(a, pad)


def _conv_w2d(w_oihw, coutp, cinp):
    # PyTorch OIHW (cout, cin, 3, 3) -> (cout_p, 9*cin_p), tap-major / channel-minor,
    # matching the patch row layout patches[t*cin_p + ci, :].
    co, ci, _, _ = w_oihw.shape
    w = jnp.transpose(w_oihw, (0, 2, 3, 1)).reshape(co, 9, ci)
    w = _pad_to(w, 2, cinp).reshape(co, 9 * cinp)
    return _pad_to(w, 0, coutp).astype(jnp.float32)


def _col(v, size):
    return _pad_to(v.reshape(-1, 1).astype(jnp.float32), 0, size)


def _tap_masks(N, H, W, Cp):
    # (9, Cp, S) float masks: 1 where tap (dy, dx) reads an in-bounds neighbor of the SAME
    # image, 0 at image borders (this also kills every roll wrap-around lane).
    S = N * H * W
    f = jnp.arange(S, dtype=jnp.int32)
    jj = f % W
    ii = (f // W) % H
    ms = []
    for dy in range(3):
        for dx in range(3):
            ok = jnp.ones((S,), bool)
            if dy == 0:
                ok = ok & (ii >= 1)
            if dy == 2:
                ok = ok & (ii <= H - 2)
            if dx == 0:
                ok = ok & (jj >= 1)
            if dx == 2:
                ok = ok & (jj <= W - 2)
            ms.append(ok)
    m = jnp.stack(ms).astype(jnp.float32)                     # (9, S)
    return jnp.broadcast_to(m[:, None, :], (9, Cp, S))        # pre-broadcast over channels


@jax.jit
def rblock_forward(x_nchw, params):
    """RBlock forward. x: (N, C, H, W) float32 (PyTorch NCHW). Returns (N, Cout, H, W)."""
    N, C, H, W = x_nchw.shape
    Cout = params["w_out"].shape[0]
    S = N * H * W
    Cp, Coutp = _round_up(C, _SUB), _round_up(Cout, _SUB)

    # (N, C, H, W) -> (Cp, N*H*W): channels on sublanes, flattened spatial on lanes.
    x2d = jnp.transpose(x_nchw, (1, 0, 2, 3)).reshape(C, S).astype(jnp.float32)
    x2d = _pad_to(x2d, 0, Cp)
    masks = _tap_masks(N, H, W, Cp)

    flat = []
    for rs in (params["rsub1"], params["rsub2"]):
        for i in ("1", "2"):
            flat += [_col(rs["g" + i], Cp), _col(rs["be" + i], Cp),
                     _conv_w2d(rs["w" + i], Cp, Cp), _col(rs["b" + i], Cp)]
    flat += [_conv_w2d(params["w_out"], Coutp, Cp), _col(params["b_out"], Coutp)]

    kernel = _make_rblock_kernel(Cp, Coutp, S, W)
    vmem = pl.BlockSpec(memory_space=pltpu.MemorySpace.VMEM)
    out2d = pl.pallas_call(
        kernel,
        out_shape=jax.ShapeDtypeStruct((Coutp, S), jnp.float32),
        in_specs=[vmem] * (2 + len(flat)),
        out_specs=vmem,
    )(x2d, masks, *flat)

    # Wrapper-side layout plumbing back to PyTorch NCHW.
    return jnp.transpose(out2d[:Cout].reshape(Cout, N, H, W), (1, 0, 2, 3))


# --------------------------- pure-JAX reference (check) ------------------------

def _rblock_reference(x, params):
    def bn_relu(x, g, b):
        mean = jnp.mean(x, axis=(0, 2, 3), keepdims=True)
        var = jnp.mean((x - mean) ** 2, axis=(0, 2, 3), keepdims=True)
        y = (x - mean) * jax.lax.rsqrt(var + _EPS)
        return jax.nn.relu(y * g.reshape(1, -1, 1, 1) + b.reshape(1, -1, 1, 1))

    def conv(x, w, b):
        y = jax.lax.conv_general_dilated(
            x, w, window_strides=(1, 1), padding=((1, 1), (1, 1)),
            dimension_numbers=("NCHW", "OIHW", "NCHW"),
            precision=jax.lax.Precision.HIGHEST)
        return y + b.reshape(1, -1, 1, 1)

    def rsub(x, p):
        r = x
        h = conv(bn_relu(x, p["g1"], p["be1"]), p["w1"], p["b1"])
        return conv(bn_relu(h, p["g2"], p["be2"]), p["w2"], p["b2"]) + r

    x = rsub(x, params["rsub1"])
    x = rsub(x, params["rsub2"])
    return conv(x, params["w_out"], params["b_out"])


# ------------------------------ parameter setup -------------------------------

def _xavier_normal_oihw(key, cout, cin):
    # xavier_normal_ on an OIHW (cout, cin, 3, 3) tensor:
    # std = sqrt(2 / (fan_in + fan_out)), fan_in = cin*9, fan_out = cout*9.
    std = (2.0 / (cin * 9 + cout * 9)) ** 0.5
    return jax.random.normal(key, (cout, cin, 3, 3), jnp.float32) * std


def init_rblock_params(key, in_channels, out_channels):
    ks = jax.random.split(key, 5)

    def rsub(k1, k2, c):
        return {
            "w1": _xavier_normal_oihw(k1, c, c), "b1": jnp.zeros((c,), jnp.float32),
            "g1": jnp.ones((c,), jnp.float32), "be1": jnp.zeros((c,), jnp.float32),
            "w2": _xavier_normal_oihw(k2, c, c), "b2": jnp.zeros((c,), jnp.float32),
            "g2": jnp.ones((c,), jnp.float32), "be2": jnp.zeros((c,), jnp.float32),
        }

    return {
        "rsub1": rsub(ks[0], ks[1], in_channels),
        "rsub2": rsub(ks[2], ks[3], in_channels),
        "w_out": _xavier_normal_oihw(ks[4], out_channels, in_channels),
        "b_out": jnp.zeros((out_channels,), jnp.float32),
    }


# ----------------------------------- main --------------------------------------

if __name__ == "__main__":
    key = jax.random.PRNGKey(0)
    k_x, k_p = jax.random.split(key)

    batch, in_channels, out_channels, spatial = 2, 4, 1, 16

    x_nchw = jax.random.normal(k_x, (batch, in_channels, spatial, spatial), jnp.float32)
    params = init_rblock_params(k_p, in_channels, out_channels)

    out_nchw = rblock_forward(x_nchw, params)
    jax.block_until_ready(out_nchw)

    assert out_nchw.shape == (batch, out_channels, spatial, spatial), out_nchw.shape
    assert bool(jnp.all(jnp.isfinite(out_nchw)))

    # Semantics check against a pure-JAX reference (loose tol absorbs MXU precision modes).
    ref = _rblock_reference(x_nchw, params)
    max_err = float(jnp.max(jnp.abs(out_nchw - ref)))
    assert max_err < 5e-2, f"max abs error vs reference: {max_err}"

    print("KERNEL_OK")
</pallas_src>

<mosaic_0001>
module attributes {stable_mosaic.version = 11 : i64} {
  func.func @kernel(%arg0: memref<8x512xf32, #tpu.memory_space<vmem>>, %arg1: memref<9x8x512xf32, #tpu.memory_space<vmem>>, %arg2: memref<8x1xf32, #tpu.memory_space<vmem>>, %arg3: memref<8x1xf32, #tpu.memory_space<vmem>>, %arg4: memref<8x72xf32, #tpu.memory_space<vmem>>, %arg5: memref<8x1xf32, #tpu.memory_space<vmem>>, %arg6: memref<8x1xf32, #tpu.memory_space<vmem>>, %arg7: memref<8x1xf32, #tpu.memory_space<vmem>>, %arg8: memref<8x72xf32, #tpu.memory_space<vmem>>, %arg9: memref<8x1xf32, #tpu.memory_space<vmem>>, %arg10: memref<8x1xf32, #tpu.memory_space<vmem>>, %arg11: memref<8x1xf32, #tpu.memory_space<vmem>>, %arg12: memref<8x72xf32, #tpu.memory_space<vmem>>, %arg13: memref<8x1xf32, #tpu.memory_space<vmem>>, %arg14: memref<8x1xf32, #tpu.memory_space<vmem>>, %arg15: memref<8x1xf32, #tpu.memory_space<vmem>>, %arg16: memref<8x72xf32, #tpu.memory_space<vmem>>, %arg17: memref<8x1xf32, #tpu.memory_space<vmem>>, %arg18: memref<8x72xf32, #tpu.memory_space<vmem>>, %arg19: memref<8x1xf32, #tpu.memory_space<vmem>>, %arg20: memref<8x512xf32, #tpu.memory_space<vmem>>) attributes {dimension_semantics = [], scalar_prefetch = 0 : i64, scratch_operands = 0 : i64, tpu.core_type = #tpu.core_type<tc>} {
    %c0 = arith.constant 0 : index
    %c0_0 = arith.constant 0 : index
    %0 = vector.load %arg0[%c0, %c0_0] : memref<8x512xf32, #tpu.memory_space<vmem>>, vector<8x512xf32>
    %cst = arith.constant dense<0.000000e+00> : vector<8xf32>
    %1 = vector.multi_reduction <add>, %0, %cst [1] : vector<8x512xf32> to vector<8xf32>
    %2 = vector.shape_cast %1 : vector<8xf32> to vector<8x1xf32>
    %cst_1 = arith.constant 5.120000e+02 : f32
    %3 = vector.broadcast %cst_1 : f32 to vector<8x1xf32>
    %4 = arith.divf %2, %3 : vector<8x1xf32>
    %5 = vector.broadcast %4 : vector<8x1xf32> to vector<8x512xf32>
    %6 = arith.subf %0, %5 : vector<8x512xf32>
    %7 = arith.mulf %6, %6 : vector<8x512xf32>
    %cst_2 = arith.constant dense<0.000000e+00> : vector<8xf32>
    %8 = vector.multi_reduction <add>, %7, %cst_2 [1] : vector<8x512xf32> to vector<8xf32>
    %9 = vector.shape_cast %8 : vector<8xf32> to vector<8x1xf32>
    %cst_3 = arith.constant 5.120000e+02 : f32
    %10 = vector.broadcast %cst_3 : f32 to vector<8x1xf32>
    %11 = arith.divf %9, %10 : vector<8x1xf32>
    %c0_4 = arith.constant 0 : index
    %c0_5 = arith.constant 0 : index
    %12 = vector.load %arg2[%c0_4, %c0_5] : memref<8x1xf32, #tpu.memory_space<vmem>>, vector<8x1xf32>
    %cst_6 = arith.constant 9.99999974E-6 : f32
    %13 = vector.broadcast %cst_6 : f32 to vector<8x1xf32>
    %14 = arith.addf %11, %13 : vector<8x1xf32>
    %15 = math.rsqrt %14 : vector<8x1xf32>
    %16 = arith.mulf %12, %15 : vector<8x1xf32>
    %c0_7 = arith.constant 0 : index
    %c0_8 = arith.constant 0 : index
    %17 = vector.load %arg3[%c0_7, %c0_8] : memref<8x1xf32, #tpu.memory_space<vmem>>, vector<8x1xf32>
    %18 = arith.mulf %4, %16 : vector<8x1xf32>
    %19 = arith.subf %17, %18 : vector<8x1xf32>
    %20 = vector.broadcast %16 : vector<8x1xf32> to vector<8x512xf32>
    %21 = arith.mulf %0, %20 : vector<8x512xf32>
    %22 = vector.broadcast %19 : vector<8x1xf32> to vector<8x512xf32>
    %23 = arith.addf %21, %22 : vector<8x512xf32>
    %cst_9 = arith.constant 0.000000e+00 : f32
    %24 = vector.broadcast %cst_9 : f32 to vector<8x512xf32>
    %25 = arith.maximumf %23, %24 : vector<8x512xf32>
    %c17_i32 = arith.constant 17 : i32
    %26 = tpu.dynamic_rotate %25 by %c17_i32 dim 1 : vector<8x512xf32>, i32 -> vector<8x512xf32>
    %c0_10 = arith.constant 0 : index
    %c0_11 = arith.constant 0 : index
    %c0_12 = arith.constant 0 : index
    %27 = vector.load %arg1[%c0_10, %c0_11, %c0_12] : memref<9x8x512xf32, #tpu.memory_space<vmem>>, vector<1x8x512xf32>
    %28 = vector.shape_cast %27 : vector<1x8x512xf32> to vector<8x512xf32>
    %29 = arith.mulf %26, %28 : vector<8x512xf32>
    %c16_i32 = arith.constant 16 : i32
    %30 = tpu.dynamic_rotate %25 by %c16_i32 dim 1 : vector<8x512xf32>, i32 -> vector<8x512xf32>
    %c1 = arith.constant 1 : index
    %c0_13 = arith.constant 0 : index
    %c0_14 = arith.constant 0 : index
    %31 = vector.load %arg1[%c1, %c0_13, %c0_14] : memref<9x8x512xf32, #tpu.memory_space<vmem>>, vector<1x8x512xf32>
    %32 = vector.shape_cast %31 : vector<1x8x512xf32> to vector<8x512xf32>
    %33 = arith.mulf %30, %32 : vector<8x512xf32>
    %c15_i32 = arith.constant 15 : i32
    %34 = tpu.dynamic_rotate %25 by %c15_i32 dim 1 : vector<8x512xf32>, i32 -> vector<8x512xf32>
    %c2 = arith.constant 2 : index
    %c0_15 = arith.constant 0 : index
    %c0_16 = arith.constant 0 : index
    %35 = vector.load %arg1[%c2, %c0_15, %c0_16] : memref<9x8x512xf32, #tpu.memory_space<vmem>>, vector<1x8x512xf32>
    %36 = vector.shape_cast %35 : vector<1x8x512xf32> to vector<8x512xf32>
    %37 = arith.mulf %34, %36 : vector<8x512xf32>
    %c1_i32 = arith.constant 1 : i32
    %38 = tpu.dynamic_rotate %25 by %c1_i32 dim 1 : vector<8x512xf32>, i32 -> vector<8x512xf32>
    %c3 = arith.constant 3 : index
    %c0_17 = arith.constant 0 : index
    %c0_18 = arith.constant 0 : index
    %39 = vector.load %arg1[%c3, %c0_17, %c0_18] : memref<9x8x512xf32, #tpu.memory_space<vmem>>, vector<1x8x512xf32>
    %40 = vector.shape_cast %39 : vector<1x8x512xf32> to vector<8x512xf32>
    %41 = arith.mulf %38, %40 : vector<8x512xf32>
    %c511_i32 = arith.constant 511 : i32
    %42 = tpu.dynamic_rotate %25 by %c511_i32 dim 1 : vector<8x512xf32>, i32 -> vector<8x512xf32>
    %c5 = arith.constant 5 : index
    %c0_19 = arith.constant 0 : index
    %c0_20 = arith.constant 0 : index
    %43 = vector.load %arg1[%c5, %c0_19, %c0_20] : memref<9x8x512xf32, #tpu.memory_space<vmem>>, vector<1x8x512xf32>
    %44 = vector.shape_cast %43 : vector<1x8x512xf32> to vector<8x512xf32>
    %45 = arith.mulf %42, %44 : vector<8x512xf32>
    %c497_i32 = arith.constant 497 : i32
    %46 = tpu.dynamic_rotate %25 by %c497_i32 dim 1 : vector<8x512xf32>, i32 -> vector<8x512xf32>
    %c6 = arith.constant 6 : index
    %c0_21 = arith.constant 0 : index
    %c0_22 = arith.constant 0 : index
    %47 = vector.load %arg1[%c6, %c0_21, %c0_22] : memref<9x8x512xf32, #tpu.memory_space<vmem>>, vector<1x8x512xf32>
    %48 = vector.shape_cast %47 : vector<1x8x512xf32> to vector<8x512xf32>
    %49 = arith.mulf %46, %48 : vector<8x512xf32>
    %c496_i32 = arith.constant 496 : i32
    %50 = tpu.dynamic_rotate %25 by %c496_i32 dim 1 : vector<8x512xf32>, i32 -> vector<8x512xf32>
    %c7 = arith.constant 7 : index
    %c0_23 = arith.constant 0 : index
    %c0_24 = arith.constant 0 : index
    %51 = vector.load %arg1[%c7, %c0_23, %c0_24] : memref<9x8x512xf32, #tpu.memory_space<vmem>>, vector<1x8x512xf32>
    %52 = vector.shape_cast %51 : vector<1x8x512xf32> to vector<8x512xf32>
    %53 = arith.mulf %50, %52 : vector<8x512xf32>
    %c495_i32 = arith.constant 495 : i32
    %54 = tpu.dynamic_rotate %25 by %c495_i32 dim 1 : vector<8x512xf32>, i32 -> vector<8x512xf32>
    %c8 = arith.constant 8 : index
    %c0_25 = arith.constant 0 : index
    %c0_26 = arith.constant 0 : index
    %55 = vector.load %arg1[%c8, %c0_25, %c0_26] : memref<9x8x512xf32, #tpu.memory_space<vmem>>, vector<1x8x512xf32>
    %56 = vector.shape_cast %55 : vector<1x8x512xf32> to vector<8x512xf32>
    %57 = arith.mulf %54, %56 : vector<8x512xf32>
    %58 = tpu.concatenate %29, %33, %37, %41, %25, %45, %49, %53, %57 in 0 : vector<8x512xf32>, vector<8x512xf32>, vector<8x512xf32>, vector<8x512xf32>, vector<8x512xf32>, vector<8x512xf32>, vector<8x512xf32>, vector<8x512xf32>, vector<8x512xf32> -> vector<72x512xf32>
    %c0_27 = arith.constant 0 : index
    %c0_28 = arith.constant 0 : index
    %59 = vector.load %arg4[%c0_27, %c0_28] : memref<8x72xf32, #tpu.memory_space<vmem>>, vector<8x72xf32>
    %cst_29 = arith.constant dense<0.000000e+00> : vector<8x512xf32>
    %60 = tpu.matmul %59, %58, %cst_29 {dimension_numbers = #tpu.dot_dimension_numbers<[1], [0], [0], [1], [0, 0, 1, 1], [], []>} : vector<8x72xf32>, vector<72x512xf32>, vector<8x512xf32> -> vector<8x512xf32>
    %c0_30 = arith.constant 0 : index
    %c0_31 = arith.constant 0 : index
    %61 = vector.load %arg5[%c0_30, %c0_31] : memref<8x1xf32, #tpu.memory_space<vmem>>, vector<8x1xf32>
    %62 = vector.broadcast %61 : vector<8x1xf32> to vector<8x512xf32>
    %63 = arith.addf %60, %62 : vector<8x512xf32>
    %cst_32 = arith.constant dense<0.000000e+00> : vector<8xf32>
    %64 = vector.multi_reduction <add>, %63, %cst_32 [1] : vector<8x512xf32> to vector<8xf32>
    %65 = vector.shape_cast %64 : vector<8xf32> to vector<8x1xf32>
    %cst_33 = arith.constant 5.120000e+02 : f32
    %66 = vector.broadcast %cst_33 : f32 to vector<8x1xf32>
    %67 = arith.divf %65, %66 : vector<8x1xf32>
    %68 = vector.broadcast %67 : vector<8x1xf32> to vector<8x512xf32>
    %69 = arith.subf %63, %68 : vector<8x512xf32>
    %70 = arith.mulf %69, %69 : vector<8x512xf32>
    %cst_34 = arith.constant dense<0.000000e+00> : vector<8xf32>
    %71 = vector.multi_reduction <add>, %70, %cst_34 [1] : vector<8x512xf32> to vector<8xf32>
    %72 = vector.shape_cast %71 : vector<8xf32> to vector<8x1xf32>
    %cst_35 = arith.constant 5.120000e+02 : f32
    %73 = vector.broadcast %cst_35 : f32 to vector<8x1xf32>
    %74 = arith.divf %72, %73 : vector<8x1xf32>
    %c0_36 = arith.constant 0 : index
    %c0_37 = arith.constant 0 : index
    %75 = vector.load %arg6[%c0_36, %c0_37] : memref<8x1xf32, #tpu.memory_space<vmem>>, vector<8x1xf32>
    %cst_38 = arith.constant 9.99999974E-6 : f32
    %76 = vector.broadcast %cst_38 : f32 to vector<8x1xf32>
    %77 = arith.addf %74, %76 : vector<8x1xf32>
    %78 = math.rsqrt %77 : vector<8x1xf32>
    %79 = arith.mulf %75, %78 : vector<8x1xf32>
    %c0_39 = arith.constant 0 : index
    %c0_40 = arith.constant 0 : index
    %80 = vector.load %arg7[%c0_39, %c0_40] : memref<8x1xf32, #tpu.memory_space<vmem>>, vector<8x1xf32>
    %81 = arith.mulf %67, %79 : vector<8x1xf32>
    %82 = arith.subf %80, %81 : vector<8x1xf32>
    %83 = vector.broadcast %79 : vector<8x1xf32> to vector<8x512xf32>
    %84 = arith.mulf %63, %83 : vector<8x512xf32>
    %85 = vector.broadcast %82 : vector<8x1xf32> to vector<8x512xf32>
    %86 = arith.addf %84, %85 : vector<8x512xf32>
    %cst_41 = arith.constant 0.000000e+00 : f32
    %87 = vector.broadcast %cst_41 : f32 to vector<8x512xf32>
    %88 = arith.maximumf %86, %87 : vector<8x512xf32>
    %c17_i32_42 = arith.constant 17 : i32
    %89 = tpu.dynamic_rotate %88 by %c17_i32_42 dim 1 : vector<8x512xf32>, i32 -> vector<8x512xf32>
    %c0_43 = arith.constant 0 : index
    %c0_44 = arith.constant 0 : index
    %c0_45 = arith.constant 0 : index
    %90 = vector.load %arg1[%c0_43, %c0_44, %c0_45] : memref<9x8x512xf32, #tpu.memory_space<vmem>>, vector<1x8x512xf32>
    %91 = vector.shape_cast %90 : vector<1x8x512xf32> to vector<8x512xf32>
    %92 = arith.mulf %89, %91 : vector<8x512xf32>
    %c16_i32_46 = arith.constant 16 : i32
    %93 = tpu.dynamic_rotate %88 by %c16_i32_46 dim 1 : vector<8x512xf32>, i32 -> vector<8x512xf32>
    %c1_47 = arith.constant 1 : index
    %c0_48 = arith.constant 0 : index
    %c0_49 = arith.constant 0 : index
    %94 = vector.load %arg1[%c1_47, %c0_48, %c0_49] : memref<9x8x512xf32, #tpu.memory_space<vmem>>, vector<1x8x512xf32>
    %95 = vector.shape_cast %94 : vector<1x8x512xf32> to vector<8x512xf32>
    %96 = arith.mulf %93, %95 : vector<8x512xf32>
    %c15_i32_50 = arith.constant 15 : i32
    %97 = tpu.dynamic_rotate %88 by %c15_i32_50 dim 1 : vector<8x512xf32>, i32 -> vector<8x512xf32>
    %c2_51 = arith.constant 2 : index
    %c0_52 = arith.constant 0 : index
    %c0_53 = arith.constant 0 : index
    %98 = vector.load %arg1[%c2_51, %c0_52, %c0_53] : memref<9x8x512xf32, #tpu.memory_space<vmem>>, vector<1x8x512xf32>
    %99 = vector.shape_cast %98 : vector<1x8x512xf32> to vector<8x512xf32>
    %100 = arith.mulf %97, %99 : vector<8x512xf32>
    %c1_i32_54 = arith.constant 1 : i32
    %101 = tpu.dynamic_rotate %88 by %c1_i32_54 dim 1 : vector<8x512xf32>, i32 -> vector<8x512xf32>
    %c3_55 = arith.constant 3 : index
    %c0_56 = arith.constant 0 : index
    %c0_57 = arith.constant 0 : index
    %102 = vector.load %arg1[%c3_55, %c0_56, %c0_57] : memref<9x8x512xf32, #tpu.memory_space<vmem>>, vector<1x8x512xf32>
    %103 = vector.shape_cast %102 : vector<1x8x512xf32> to vector<8x512xf32>
    %104 = arith.mulf %101, %103 : vector<8x512xf32>
    %c511_i32_58 = arith.constant 511 : i32
    %105 = tpu.dynamic_rotate %88 by %c511_i32_58 dim 1 : vector<8x512xf32>, i32 -> vector<8x512xf32>
    %c5_59 = arith.constant 5 : index
    %c0_60 = arith.constant 0 : index
    %c0_61 = arith.constant 0 : index
    %106 = vector.load %arg1[%c5_59, %c0_60, %c0_61] : memref<9x8x512xf32, #tpu.memory_space<vmem>>, vector<1x8x512xf32>
    %107 = vector.shape_cast %106 : vector<1x8x512xf32> to vector<8x512xf32>
    %108 = arith.mulf %105, %107 : vector<8x512xf32>
    %c497_i32_62 = arith.constant 497 : i32
    %109 = tpu.dynamic_rotate %88 by %c497_i32_62 dim 1 : vector<8x512xf32>, i32 -> vector<8x512xf32>
    %c6_63 = arith.constant 6 : index
    %c0_64 = arith.constant 0 : index
    %c0_65 = arith.constant 0 : index
    %110 = vector.load %arg1[%c6_63, %c0_64, %c0_65] : memref<9x8x512xf32, #tpu.memory_space<vmem>>, vector<1x8x512xf32>
    %111 = vector.shape_cast %110 : vector<1x8x512xf32> to vector<8x512xf32>
    %112 = arith.mulf %109, %111 : vector<8x512xf32>
    %c496_i32_66 = arith.constant 496 : i32
    %113 = tpu.dynamic_rotate %88 by %c496_i32_66 dim 1 : vector<8x512xf32>, i32 -> vector<8x512xf32>
    %c7_67 = arith.constant 7 : index
    %c0_68 = arith.constant 0 : index
    %c0_69 = arith.constant 0 : index
    %114 = vector.load %arg1[%c7_67, %c0_68, %c0_69] : memref<9x8x512xf32, #tpu.memory_space<vmem>>, vector<1x8x512xf32>
    %115 = vector.shape_cast %114 : vector<1x8x512xf32> to vector<8x512xf32>
    %116 = arith.mulf %113, %115 : vector<8x512xf32>
    %c495_i32_70 = arith.constant 495 : i32
    %117 = tpu.dynamic_rotate %88 by %c495_i32_70 dim 1 : vector<8x512xf32>, i32 -> vector<8x512xf32>
    %c8_71 = arith.constant 8 : index
    %c0_72 = arith.constant 0 : index
    %c0_73 = arith.constant 0 : index
    %118 = vector.load %arg1[%c8_71, %c0_72, %c0_73] : memref<9x8x512xf32, #tpu.memory_space<vmem>>, vector<1x8x512xf32>
    %119 = vector.shape_cast %118 : vector<1x8x512xf32> to vector<8x512xf32>
    %120 = arith.mulf %117, %119 : vector<8x512xf32>
    %121 = tpu.concatenate %92, %96, %100, %104, %88, %108, %112, %116, %120 in 0 : vector<8x512xf32>, vector<8x512xf32>, vector<8x512xf32>, vector<8x512xf32>, vector<8x512xf32>, vector<8x512xf32>, vector<8x512xf32>, vector<8x512xf32>, vector<8x512xf32> -> vector<72x512xf32>
    %c0_74 = arith.constant 0 : index
    %c0_75 = arith.constant 0 : index
    %122 = vector.load %arg8[%c0_74, %c0_75] : memref<8x72xf32, #tpu.memory_space<vmem>>, vector<8x72xf32>
    %cst_76 = arith.constant dense<0.000000e+00> : vector<8x512xf32>
    %123 = tpu.matmul %122, %121, %cst_76 {dimension_numbers = #tpu.dot_dimension_numbers<[1], [0], [0], [1], [0, 0, 1, 1], [], []>} : vector<8x72xf32>, vector<72x512xf32>, vector<8x512xf32> -> vector<8x512xf32>
    %c0_77 = arith.constant 0 : index
    %c0_78 = arith.constant 0 : index
    %124 = vector.load %arg9[%c0_77, %c0_78] : memref<8x1xf32, #tpu.memory_space<vmem>>, vector<8x1xf32>
    %125 = vector.broadcast %124 : vector<8x1xf32> to vector<8x512xf32>
    %126 = arith.addf %123, %125 : vector<8x512xf32>
    %127 = arith.addf %126, %0 : vector<8x512xf32>
    %cst_79 = arith.constant dense<0.000000e+00> : vector<8xf32>
    %128 = vector.multi_reduction <add>, %127, %cst_79 [1] : vector<8x512xf32> to vector<8xf32>
    %129 = vector.shape_cast %128 : vector<8xf32> to vector<8x1xf32>
    %cst_80 = arith.constant 5.120000e+02 : f32
    %130 = vector.broadcast %cst_80 : f32 to vector<8x1xf32>
    %131 = arith.divf %129, %130 : vector<8x1xf32>
    %132 = vector.broadcast %131 : vector<8x1xf32> to vector<8x512xf32>
    %133 = arith.subf %127, %132 : vector<8x512xf32>
    %134 = arith.mulf %133, %133 : vector<8x512xf32>
    %cst_81 = arith.constant dense<0.000000e+00> : vector<8xf32>
    %135 = vector.multi_reduction <add>, %134, %cst_81 [1] : vector<8x512xf32> to vector<8xf32>
    %136 = vector.shape_cast %135 : vector<8xf32> to vector<8x1xf32>
    %cst_82 = arith.constant 5.120000e+02 : f32
    %137 = vector.broadcast %cst_82 : f32 to vector<8x1xf32>
    %138 = arith.divf %136, %137 : vector<8x1xf32>
    %c0_83 = arith.constant 0 : index
    %c0_84 = arith.constant 0 : index
    %139 = vector.load %arg10[%c0_83, %c0_84] : memref<8x1xf32, #tpu.memory_space<vmem>>, vector<8x1xf32>
    %cst_85 = arith.constant 9.99999974E-6 : f32
    %140 = vector.broadcast %cst_85 : f32 to vector<8x1xf32>
    %141 = arith.addf %138, %140 : vector<8x1xf32>
    %142 = math.rsqrt %141 : vector<8x1xf32>
    %143 = arith.mulf %139, %142 : vector<8x1xf32>
    %c0_86 = arith.constant 0 : index
    %c0_87 = arith.constant 0 : index
    %144 = vector.load %arg11[%c0_86, %c0_87] : memref<8x1xf32, #tpu.memory_space<vmem>>, vector<8x1xf32>
    %145 = arith.mulf %131, %143 : vector<8x1xf32>
    %146 = arith.subf %144, %145 : vector<8x1xf32>
    %147 = vector.broadcast %143 : vector<8x1xf32> to vector<8x512xf32>
    %148 = arith.mulf %127, %147 : vector<8x512xf32>
    %149 = vector.broadcast %146 : vector<8x1xf32> to vector<8x512xf32>
    %150 = arith.addf %148, %149 : vector<8x512xf32>
    %cst_88 = arith.constant 0.000000e+00 : f32
    %151 = vector.broadcast %cst_88 : f32 to vector<8x512xf32>
    %152 = arith.maximumf %150, %151 : vector<8x512xf32>
    %c17_i32_89 = arith.constant 17 : i32
    %153 = tpu.dynamic_rotate %152 by %c17_i32_89 dim 1 : vector<8x512xf32>, i32 -> vector<8x512xf32>
    %c0_90 = arith.constant 0 : index
    %c0_91 = arith.constant 0 : index
    %c0_92 = arith.constant 0 : index
    %154 = vector.load %arg1[%c0_90, %c0_91, %c0_92] : memref<9x8x512xf32, #tpu.memory_space<vmem>>, vector<1x8x512xf32>
    %155 = vector.shape_cast %154 : vector<1x8x512xf32> to vector<8x512xf32>
    %156 = arith.mulf %153, %155 : vector<8x512xf32>
    %c16_i32_93 = arith.constant 16 : i32
    %157 = tpu.dynamic_rotate %152 by %c16_i32_93 dim 1 : vector<8x512xf32>, i32 -> vector<8x512xf32>
    %c1_94 = arith.constant 1 : index
    %c0_95 = arith.constant 0 : index
    %c0_96 = arith.constant 0 : index
    %158 = vector.load %arg1[%c1_94, %c0_95, %c0_96] : memref<9x8x512xf32, #tpu.memory_space<vmem>>, vector<1x8x512xf32>
    %159 = vector.shape_cast %158 : vector<1x8x512xf32> to vector<8x512xf32>
    %160 = arith.mulf %157, %159 : vector<8x512xf32>
    %c15_i32_97 = arith.constant 15 : i32
    %161 = tpu.dynamic_rotate %152 by %c15_i32_97 dim 1 : vector<8x512xf32>, i32 -> vector<8x512xf32>
    %c2_98 = arith.constant 2 : index
    %c0_99 = arith.constant 0 : index
    %c0_100 = arith.constant 0 : index
    %162 = vector.load %arg1[%c2_98, %c0_99, %c0_100] : memref<9x8x512xf32, #tpu.memory_space<vmem>>, vector<1x8x512xf32>
    %163 = vector.shape_cast %162 : vector<1x8x512xf32> to vector<8x512xf32>
    %164 = arith.mulf %161, %163 : vector<8x512xf32>
    %c1_i32_101 = arith.constant 1 : i32
    %165 = tpu.dynamic_rotate %152 by %c1_i32_101 dim 1 : vector<8x512xf32>, i32 -> vector<8x512xf32>
    %c3_102 = arith.constant 3 : index
    %c0_103 = arith.constant 0 : index
    %c0_104 = arith.constant 0 : index
    %166 = vector.load %arg1[%c3_102, %c0_103, %c0_104] : memref<9x8x512xf32, #tpu.memory_space<vmem>>, vector<1x8x512xf32>
    %167 = vector.shape_cast %166 : vector<1x8x512xf32> to vector<8x512xf32>
    %168 = arith.mulf %165, %167 : vector<8x512xf32>
    %c511_i32_105 = arith.constant 511 : i32
    %169 = tpu.dynamic_rotate %152 by %c511_i32_105 dim 1 : vector<8x512xf32>, i32 -> vector<8x512xf32>
    %c5_106 = arith.constant 5 : index
    %c0_107 = arith.constant 0 : index
    %c0_108 = arith.constant 0 : index
    %170 = vector.load %arg1[%c5_106, %c0_107, %c0_108] : memref<9x8x512xf32, #tpu.memory_space<vmem>>, vector<1x8x512xf32>
    %171 = vector.shape_cast %170 : vector<1x8x512xf32> to vector<8x512xf32>
    %172 = arith.mulf %169, %171 : vector<8x512xf32>
    %c497_i32_109 = arith.constant 497 : i32
    %173 = tpu.dynamic_rotate %152 by %c497_i32_109 dim 1 : vector<8x512xf32>, i32 -> vector<8x512xf32>
    %c6_110 = arith.constant 6 : index
    %c0_111 = arith.constant 0 : index
    %c0_112 = arith.constant 0 : index
    %174 = vector.load %arg1[%c6_110, %c0_111, %c0_112] : memref<9x8x512xf32, #tpu.memory_space<vmem>>, vector<1x8x512xf32>
    %175 = vector.shape_cast %174 : vector<1x8x512xf32> to vector<8x512xf32>
    %176 = arith.mulf %173, %175 : vector<8x512xf32>
    %c496_i32_113 = arith.constant 496 : i32
    %177 = tpu.dynamic_rotate %152 by %c496_i32_113 dim 1 : vector<8x512xf32>, i32 -> vector<8x512xf32>
    %c7_114 = arith.constant 7 : index
    %c0_115 = arith.constant 0 : index
    %c0_116 = arith.constant 0 : index
    %178 = vector.load %arg1[%c7_114, %c0_115, %c0_116] : memref<9x8x512xf32, #tpu.memory_space<vmem>>, vector<1x8x512xf32>
    %179 = vector.shape_cast %178 : vector<1x8x512xf32> to vector<8x512xf32>
    %180 = arith.mulf %177, %179 : vector<8x512xf32>
    %c495_i32_117 = arith.constant 495 : i32
    %181 = tpu.dynamic_rotate %152 by %c495_i32_117 dim 1 : vector<8x512xf32>, i32 -> vector<8x512xf32>
    %c8_118 = arith.constant 8 : index
    %c0_119 = arith.constant 0 : index
    %c0_120 = arith.constant 0 : index
    %182 = vector.load %arg1[%c8_118, %c0_119, %c0_120] : memref<9x8x512xf32, #tpu.memory_space<vmem>>, vector<1x8x512xf32>
    %183 = vector.shape_cast %182 : vector<1x8x512xf32> to vector<8x512xf32>
    %184 = arith.mulf %181, %183 : vector<8x512xf32>
    %185 = tpu.concatenate %156, %160, %164, %168, %152, %172, %176, %180, %184 in 0 : vector<8x512xf32>, vector<8x512xf32>, vector<8x512xf32>, vector<8x512xf32>, vector<8x512xf32>, vector<8x512xf32>, vector<8x512xf32>, vector<8x512xf32>, vector<8x512xf32> -> vector<72x512xf32>
    %c0_121 = arith.constant 0 : index
    %c0_122 = arith.constant 0 : index
    %186 = vector.load %arg12[%c0_121, %c0_122] : memref<8x72xf32, #tpu.memory_space<vmem>>, vector<8x72xf32>
    %cst_123 = arith.constant dense<0.000000e+00> : vector<8x512xf32>
    %187 = tpu.matmul %186, %185, %cst_123 {dimension_numbers = #tpu.dot_dimension_numbers<[1], [0], [0], [1], [0, 0, 1, 1], [], []>} : vector<8x72xf32>, vector<72x512xf32>, vector<8x512xf32> -> vector<8x512xf32>
    %c0_124 = arith.constant 0 : index
    %c0_125 = arith.constant 0 : index
    %188 = vector.load %arg13[%c0_124, %c0_125] : memref<8x1xf32, #tpu.memory_space<vmem>>, vector<8x1xf32>
    %189 = vector.broadcast %188 : vector<8x1xf32> to vector<8x512xf32>
    %190 = arith.addf %187, %189 : vector<8x512xf32>
    %cst_126 = arith.constant dense<0.000000e+00> : vector<8xf32>
    %191 = vector.multi_reduction <add>, %190, %cst_126 [1] : vector<8x512xf32> to vector<8xf32>
    %192 = vector.shape_cast %191 : vector<8xf32> to vector<8x1xf32>
    %cst_127 = arith.constant 5.120000e+02 : f32
    %193 = vector.broadcast %cst_127 : f32 to vector<8x1xf32>
    %194 = arith.divf %192, %193 : vector<8x1xf32>
    %195 = vector.broadcast %194 : vector<8x1xf32> to vector<8x512xf32>
    %196 = arith.subf %190, %195 : vector<8x512xf32>
    %197 = arith.mulf %196, %196 : vector<8x512xf32>
    %cst_128 = arith.constant dense<0.000000e+00> : vector<8xf32>
    %198 = vector.multi_reduction <add>, %197, %cst_128 [1] : vector<8x512xf32> to vector<8xf32>
    %199 = vector.shape_cast %198 : vector<8xf32> to vector<8x1xf32>
    %cst_129 = arith.constant 5.120000e+02 : f32
    %200 = vector.broadcast %cst_129 : f32 to vector<8x1xf32>
    %201 = arith.divf %199, %200 : vector<8x1xf32>
    %c0_130 = arith.constant 0 : index
    %c0_131 = arith.constant 0 : index
    %202 = vector.load %arg14[%c0_130, %c0_131] : memref<8x1xf32, #tpu.memory_space<vmem>>, vector<8x1xf32>
    %cst_132 = arith.constant 9.99999974E-6 : f32
    %203 = vector.broadcast %cst_132 : f32 to vector<8x1xf32>
    %204 = arith.addf %201, %203 : vector<8x1xf32>
    %205 = math.rsqrt %204 : vector<8x1xf32>
    %206 = arith.mulf %202, %205 : vector<8x1xf32>
    %c0_133 = arith.constant 0 : index
    %c0_134 = arith.constant 0 : index
    %207 = vector.load %arg15[%c0_133, %c0_134] : memref<8x1xf32, #tpu.memory_space<vmem>>, vector<8x1xf32>
    %208 = arith.mulf %194, %206 : vector<8x1xf32>
    %209 = arith.subf %207, %208 : vector<8x1xf32>
    %210 = vector.broadcast %206 : vector<8x1xf32> to vector<8x512xf32>
    %211 = arith.mulf %190, %210 : vector<8x512xf32>
    %212 = vector.broadcast %209 : vector<8x1xf32> to vector<8x512xf32>
    %213 = arith.addf %211, %212 : vector<8x512xf32>
    %cst_135 = arith.constant 0.000000e+00 : f32
    %214 = vector.broadcast %cst_135 : f32 to vector<8x512xf32>
    %215 = arith.maximumf %213, %214 : vector<8x512xf32>
    %c17_i32_136 = arith.constant 17 : i32
    %216 = tpu.dynamic_rotate %215 by %c17_i32_136 dim 1 : vector<8x512xf32>, i32 -> vector<8x512xf32>
    %c0_137 = arith.constant 0 : index
    %c0_138 = arith.constant 0 : index
    %c0_139 = arith.constant 0 : index
    %217 = vector.load %arg1[%c0_137, %c0_138, %c0_139] : memref<9x8x512xf32, #tpu.memory_space<vmem>>, vector<1x8x512xf32>
    %218 = vector.shape_cast %217 : vector<1x8x512xf32> to vector<8x512xf32>
    %219 = arith.mulf %216, %218 : vector<8x512xf32>
    %c16_i32_140 = arith.constant 16 : i32
    %220 = tpu.dynamic_rotate %215 by %c16_i32_140 dim 1 : vector<8x512xf32>, i32 -> vector<8x512xf32>
    %c1_141 = arith.constant 1 : index
    %c0_142 = arith.constant 0 : index
    %c0_143 = arith.constant 0 : index
    %221 = vector.load %arg1[%c1_141, %c0_142, %c0_143] : memref<9x8x512xf32, #tpu.memory_space<vmem>>, vector<1x8x512xf32>
    %222 = vector.shape_cast %221 : vector<1x8x512xf32> to vector<8x512xf32>
    %223 = arith.mulf %220, %222 : vector<8x512xf32>
    %c15_i32_144 = arith.constant 15 : i32
    %224 = tpu.dynamic_rotate %215 by %c15_i32_144 dim 1 : vector<8x512xf32>, i32 -> vector<8x512xf32>
    %c2_145 = arith.constant 2 : index
    %c0_146 = arith.constant 0 : index
    %c0_147 = arith.constant 0 : index
    %225 = vector.load %arg1[%c2_145, %c0_146, %c0_147] : memref<9x8x512xf32, #tpu.memory_space<vmem>>, vector<1x8x512xf32>
    %226 = vector.shape_cast %225 : vector<1x8x512xf32> to vector<8x512xf32>
    %227 = arith.mulf %224, %226 : vector<8x512xf32>
    %c1_i32_148 = arith.constant 1 : i32
    %228 = tpu.dynamic_rotate %215 by %c1_i32_148 dim 1 : vector<8x512xf32>, i32 -> vector<8x512xf32>
    %c3_149 = arith.constant 3 : index
    %c0_150 = arith.constant 0 : index
    %c0_151 = arith.constant 0 : index
    %229 = vector.load %arg1[%c3_149, %c0_150, %c0_151] : memref<9x8x512xf32, #tpu.memory_space<vmem>>, vector<1x8x512xf32>
    %230 = vector.shape_cast %229 : vector<1x8x512xf32> to vector<8x512xf32>
    %231 = arith.mulf %228, %230 : vector<8x512xf32>
    %c511_i32_152 = arith.constant 511 : i32
    %232 = tpu.dynamic_rotate %215 by %c511_i32_152 dim 1 : vector<8x512xf32>, i32 -> vector<8x512xf32>
    %c5_153 = arith.constant 5 : index
    %c0_154 = arith.constant 0 : index
    %c0_155 = arith.constant 0 : index
    %233 = vector.load %arg1[%c5_153, %c0_154, %c0_155] : memref<9x8x512xf32, #tpu.memory_space<vmem>>, vector<1x8x512xf32>
    %234 = vector.shape_cast %233 : vector<1x8x512xf32> to vector<8x512xf32>
    %235 = arith.mulf %232, %234 : vector<8x512xf32>
    %c497_i32_156 = arith.constant 497 : i32
    %236 = tpu.dynamic_rotate %215 by %c497_i32_156 dim 1 : vector<8x512xf32>, i32 -> vector<8x512xf32>
    %c6_157 = arith.constant 6 : index
    %c0_158 = arith.constant 0 : index
    %c0_159 = arith.constant 0 : index
    %237 = vector.load %arg1[%c6_157, %c0_158, %c0_159] : memref<9x8x512xf32, #tpu.memory_space<vmem>>, vector<1x8x512xf32>
    %238 = vector.shape_cast %237 : vector<1x8x512xf32> to vector<8x512xf32>
    %239 = arith.mulf %236, %238 : vector<8x512xf32>
    %c496_i32_160 = arith.constant 496 : i32
    %240 = tpu.dynamic_rotate %215 by %c496_i32_160 dim 1 : vector<8x512xf32>, i32 -> vector<8x512xf32>
    %c7_161 = arith.constant 7 : index
    %c0_162 = arith.constant 0 : index
    %c0_163 = arith.constant 0 : index
    %241 = vector.load %arg1[%c7_161, %c0_162, %c0_163] : memref<9x8x512xf32, #tpu.memory_space<vmem>>, vector<1x8x512xf32>
    %242 = vector.shape_cast %241 : vector<1x8x512xf32> to vector<8x512xf32>
    %243 = arith.mulf %240, %242 : vector<8x512xf32>
    %c495_i32_164 = arith.constant 495 : i32
    %244 = tpu.dynamic_rotate %215 by %c495_i32_164 dim 1 : vector<8x512xf32>, i32 -> vector<8x512xf32>
    %c8_165 = arith.constant 8 : index
    %c0_166 = arith.constant 0 : index
    %c0_167 = arith.constant 0 : index
    %245 = vector.load %arg1[%c8_165, %c0_166, %c0_167] : memref<9x8x512xf32, #tpu.memory_space<vmem>>, vector<1x8x512xf32>
    %246 = vector.shape_cast %245 : vector<1x8x512xf32> to vector<8x512xf32>
    %247 = arith.mulf %244, %246 : vector<8x512xf32>
    %248 = tpu.concatenate %219, %223, %227, %231, %215, %235, %239, %243, %247 in 0 : vector<8x512xf32>, vector<8x512xf32>, vector<8x512xf32>, vector<8x512xf32>, vector<8x512xf32>, vector<8x512xf32>, vector<8x512xf32>, vector<8x512xf32>, vector<8x512xf32> -> vector<72x512xf32>
    %c0_168 = arith.constant 0 : index
    %c0_169 = arith.constant 0 : index
    %249 = vector.load %arg16[%c0_168, %c0_169] : memref<8x72xf32, #tpu.memory_space<vmem>>, vector<8x72xf32>
    %cst_170 = arith.constant dense<0.000000e+00> : vector<8x512xf32>
    %250 = tpu.matmul %249, %248, %cst_170 {dimension_numbers = #tpu.dot_dimension_numbers<[1], [0], [0], [1], [0, 0, 1, 1], [], []>} : vector<8x72xf32>, vector<72x512xf32>, vector<8x512xf32> -> vector<8x512xf32>
    %c0_171 = arith.constant 0 : index
    %c0_172 = arith.constant 0 : index
    %251 = vector.load %arg17[%c0_171, %c0_172] : memref<8x1xf32, #tpu.memory_space<vmem>>, vector<8x1xf32>
    %252 = vector.broadcast %251 : vector<8x1xf32> to vector<8x512xf32>
    %253 = arith.addf %250, %252 : vector<8x512xf32>
    %254 = arith.addf %253, %127 : vector<8x512xf32>
    %c17_i32_173 = arith.constant 17 : i32
    %255 = tpu.dynamic_rotate %254 by %c17_i32_173 dim 1 : vector<8x512xf32>, i32 -> vector<8x512xf32>
    %c0_174 = arith.constant 0 : index
    %c0_175 = arith.constant 0 : index
    %c0_176 = arith.constant 0 : index
    %256 = vector.load %arg1[%c0_174, %c0_175, %c0_176] : memref<9x8x512xf32, #tpu.memory_space<vmem>>, vector<1x8x512xf32>
    %257 = vector.shape_cast %256 : vector<1x8x512xf32> to vector<8x512xf32>
    %258 = arith.mulf %255, %257 : vector<8x512xf32>
    %c16_i32_177 = arith.constant 16 : i32
    %259 = tpu.dynamic_rotate %254 by %c16_i32_177 dim 1 : vector<8x512xf32>, i32 -> vector<8x512xf32>
    %c1_178 = arith.constant 1 : index
    %c0_179 = arith.constant 0 : index
    %c0_180 = arith.constant 0 : index
    %260 = vector.load %arg1[%c1_178, %c0_179, %c0_180] : memref<9x8x512xf32, #tpu.memory_space<vmem>>, vector<1x8x512xf32>
    %261 = vector.shape_cast %260 : vector<1x8x512xf32> to vector<8x512xf32>
    %262 = arith.mulf %259, %261 : vector<8x512xf32>
    %c15_i32_181 = arith.constant 15 : i32
    %263 = tpu.dynamic_rotate %254 by %c15_i32_181 dim 1 : vector<8x512xf32>, i32 -> vector<8x512xf32>
    %c2_182 = arith.constant 2 : index
    %c0_183 = arith.constant 0 : index
    %c0_184 = arith.constant 0 : index
    %264 = vector.load %arg1[%c2_182, %c0_183, %c0_184] : memref<9x8x512xf32, #tpu.memory_space<vmem>>, vector<1x8x512xf32>
    %265 = vector.shape_cast %264 : vector<1x8x512xf32> to vector<8x512xf32>
    %266 = arith.mulf %263, %265 : vector<8x512xf32>
    %c1_i32_185 = arith.constant 1 : i32
    %267 = tpu.dynamic_rotate %254 by %c1_i32_185 dim 1 : vector<8x512xf32>, i32 -> vector<8x512xf32>
    %c3_186 = arith.constant 3 : index
    %c0_187 = arith.constant 0 : index
    %c0_188 = arith.constant 0 : index
    %268 = vector.load %arg1[%c3_186, %c0_187, %c0_188] : memref<9x8x512xf32, #tpu.memory_space<vmem>>, vector<1x8x512xf32>
    %269 = vector.shape_cast %268 : vector<1x8x512xf32> to vector<8x512xf32>
    %270 = arith.mulf %267, %269 : vector<8x512xf32>
    %c511_i32_189 = arith.constant 511 : i32
    %271 = tpu.dynamic_rotate %254 by %c511_i32_189 dim 1 : vector<8x512xf32>, i32 -> vector<8x512xf32>
    %c5_190 = arith.constant 5 : index
    %c0_191 = arith.constant 0 : index
    %c0_192 = arith.constant 0 : index
    %272 = vector.load %arg1[%c5_190, %c0_191, %c0_192] : memref<9x8x512xf32, #tpu.memory_space<vmem>>, vector<1x8x512xf32>
    %273 = vector.shape_cast %272 : vector<1x8x512xf32> to vector<8x512xf32>
    %274 = arith.mulf %271, %273 : vector<8x512xf32>
    %c497_i32_193 = arith.constant 497 : i32
    %275 = tpu.dynamic_rotate %254 by %c497_i32_193 dim 1 : vector<8x512xf32>, i32 -> vector<8x512xf32>
    %c6_194 = arith.constant 6 : index
    %c0_195 = arith.constant 0 : index
    %c0_196 = arith.constant 0 : index
    %276 = vector.load %arg1[%c6_194, %c0_195, %c0_196] : memref<9x8x512xf32, #tpu.memory_space<vmem>>, vector<1x8x512xf32>
    %277 = vector.shape_cast %276 : vector<1x8x512xf32> to vector<8x512xf32>
    %278 = arith.mulf %275, %277 : vector<8x512xf32>
    %c496_i32_197 = arith.constant 496 : i32
    %279 = tpu.dynamic_rotate %254 by %c496_i32_197 dim 1 : vector<8x512xf32>, i32 -> vector<8x512xf32>
    %c7_198 = arith.constant 7 : index
    %c0_199 = arith.constant 0 : index
    %c0_200 = arith.constant 0 : index
    %280 = vector.load %arg1[%c7_198, %c0_199, %c0_200] : memref<9x8x512xf32, #tpu.memory_space<vmem>>, vector<1x8x512xf32>
    %281 = vector.shape_cast %280 : vector<1x8x512xf32> to vector<8x512xf32>
    %282 = arith.mulf %279, %281 : vector<8x512xf32>
    %c495_i32_201 = arith.constant 495 : i32
    %283 = tpu.dynamic_rotate %254 by %c495_i32_201 dim 1 : vector<8x512xf32>, i32 -> vector<8x512xf32>
    %c8_202 = arith.constant 8 : index
    %c0_203 = arith.constant 0 : index
    %c0_204 = arith.constant 0 : index
    %284 = vector.load %arg1[%c8_202, %c0_203, %c0_204] : memref<9x8x512xf32, #tpu.memory_space<vmem>>, vector<1x8x512xf32>
    %285 = vector.shape_cast %284 : vector<1x8x512xf32> to vector<8x512xf32>
    %286 = arith.mulf %283, %285 : vector<8x512xf32>
    %287 = tpu.concatenate %258, %262, %266, %270, %254, %274, %278, %282, %286 in 0 : vector<8x512xf32>, vector<8x512xf32>, vector<8x512xf32>, vector<8x512xf32>, vector<8x512xf32>, vector<8x512xf32>, vector<8x512xf32>, vector<8x512xf32>, vector<8x512xf32> -> vector<72x512xf32>
    %c0_205 = arith.constant 0 : index
    %c0_206 = arith.constant 0 : index
    %288 = vector.load %arg18[%c0_205, %c0_206] : memref<8x72xf32, #tpu.memory_space<vmem>>, vector<8x72xf32>
    %cst_207 = arith.constant dense<0.000000e+00> : vector<8x512xf32>
    %289 = tpu.matmul %288, %287, %cst_207 {dimension_numbers = #tpu.dot_dimension_numbers<[1], [0], [0], [1], [0, 0, 1, 1], [], []>} : vector<8x72xf32>, vector<72x512xf32>, vector<8x512xf32> -> vector<8x512xf32>
    %c0_208 = arith.constant 0 : index
    %c0_209 = arith.constant 0 : index
    %290 = vector.load %arg19[%c0_208, %c0_209] : memref<8x1xf32, #tpu.memory_space<vmem>>, vector<8x1xf32>
    %291 = vector.broadcast %290 : vector<8x1xf32> to vector<8x512xf32>
    %292 = arith.addf %289, %291 : vector<8x512xf32>
    %c0_210 = arith.constant 0 : index
    %c0_211 = arith.constant 0 : index
    %293 = vector.load %arg20[%c0_210, %c0_211] : memref<8x512xf32, #tpu.memory_space<vmem>>, vector<8x512xf32>
    tpu.vector_store %arg20[%c0_210, %c0_211], %292 {strides = array<i32>} : memref<8x512xf32, #tpu.memory_space<vmem>>, vector<8x512xf32>,
    return
  }
}

</mosaic_0001>

<llo_original>
// kernel: rblock_forward.1
$region0: #{rblock_forward.1}
  #allocation0 [shape = 'u32[]', space=smem, size = 0x4, offset = 0x4, fixed_abs, tag = 'smem constant byte address 0x4 - core index']
  #allocation1 [shape = 'u32[144,128]{1,0:T(1,128)}', space=vmem, size = 0x12000, scoped, tag = 'internal scratch']
  %s0 = inlined_call_operand.vmem [shape: f32[8,512], index: 0, kind: input, shape index: {}]
  %s1 = inlined_call_operand.vmem [shape: f32[9,8,512], index: 1, kind: input, shape index: {}]
  %s2 = inlined_call_operand.vmem [shape: f32[8,1], index: 2, kind: input, shape index: {}]
  %s3 = inlined_call_operand.vmem [shape: f32[8,1], index: 3, kind: input, shape index: {}]
  %s4 = inlined_call_operand.vmem [shape: f32[8,72], index: 4, kind: input, shape index: {}]
  %s5 = inlined_call_operand.vmem [shape: f32[8,1], index: 5, kind: input, shape index: {}]
  %s6 = inlined_call_operand.vmem [shape: f32[8,1], index: 6, kind: input, shape index: {}]
  %s7 = inlined_call_operand.vmem [shape: f32[8,1], index: 7, kind: input, shape index: {}]
  %s8 = inlined_call_operand.vmem [shape: f32[8,72], index: 8, kind: input, shape index: {}]
  %s9 = inlined_call_operand.vmem [shape: f32[8,1], index: 9, kind: input, shape index: {}]
  %s10 = inlined_call_operand.vmem [shape: f32[8,1], index: 10, kind: input, shape index: {}]
  %s11 = inlined_call_operand.vmem [shape: f32[8,1], index: 11, kind: input, shape index: {}]
  %s12 = inlined_call_operand.vmem [shape: f32[8,72], index: 12, kind: input, shape index: {}]
  %s13 = inlined_call_operand.vmem [shape: f32[8,1], index: 13, kind: input, shape index: {}]
  %s14 = inlined_call_operand.vmem [shape: f32[8,1], index: 14, kind: input, shape index: {}]
  %s15 = inlined_call_operand.vmem [shape: f32[8,1], index: 15, kind: input, shape index: {}]
  %s16 = inlined_call_operand.vmem [shape: f32[8,72], index: 16, kind: input, shape index: {}]
  %s17 = inlined_call_operand.vmem [shape: f32[8,1], index: 17, kind: input, shape index: {}]
  %s18 = inlined_call_operand.vmem [shape: f32[8,72], index: 18, kind: input, shape index: {}]
  %s19 = inlined_call_operand.vmem [shape: f32[8,1], index: 19, kind: input, shape index: {}]
  %s20 = inlined_call_operand.vmem [shape: f32[8,512], index: 20, kind: output, shape index: {}]
  %s21 = sld [smem:[#allocation0]]
  $region90: #{rblock_forward.1} parent=0
    _
  %s23 = ssub.s32 1, %s21
  %s24 = scalar_select 0, %s23, %s21
  // Predicated region
  $region2: #{rblock_forward.1} parent=0 // pred_check
    _
  $region3: #{rblock_forward.1} parent=0 // pred_check_branch
    %26 = sbr.rel (0) target = $region5
  $region4: #{rblock_forward.1} parent=0 // pred_region
    _
  $region5: #{rblock_forward.1} parent=0 // pred_fallthru
    _
  // Predicated region
  $region6: #{rblock_forward.1} parent=0 // pred_check
    _
  $region7: #{rblock_forward.1} parent=0 // pred_check_branch
    %28 = sbr.rel (0) target = $region9
  $region8: #{rblock_forward.1} parent=0 // pred_region
    _
  $region9: #{rblock_forward.1} parent=0 // pred_fallthru
    _
  // Predicated region
  $region10: #{rblock_forward.1} parent=0 // pred_check
    _
  $region11: #{rblock_forward.1} parent=0 // pred_check_branch
    %30 = sbr.rel (0) target = $region13
  $region12: #{rblock_forward.1} parent=0 // pred_region
    _
  $region13: #{rblock_forward.1} parent=0 // pred_fallthru
    _
  // Predicated region
  $region14: #{rblock_forward.1} parent=0 // pred_check
    _
  $region15: #{rblock_forward.1} parent=0 // pred_check_branch
    %32 = sbr.rel (0) target = $region17
  $region16: #{rblock_forward.1} parent=0 // pred_region
    _
  $region17: #{rblock_forward.1} parent=0 // pred_fallthru
    _
  // Predicated region
  $region18: #{rblock_forward.1} parent=0 // pred_check
    _
  $region19: #{rblock_forward.1} parent=0 // pred_check_branch
    %34 = sbr.rel (0) target = $region21
  $region20: #{rblock_forward.1} parent=0 // pred_region
    _
  $region21: #{rblock_forward.1} parent=0 // pred_fallthru
    _
  // Predicated region
  $region22: #{rblock_forward.1} parent=0 // pred_check
    _
  $region23: #{rblock_forward.1} parent=0 // pred_check_branch
    %36 = sbr.rel (0) target = $region25
  $region24: #{rblock_forward.1} parent=0 // pred_region
    _
  $region25: #{rblock_forward.1} parent=0 // pred_fallthru
    _
  // Predicated region
  $region26: #{rblock_forward.1} parent=0 // pred_check
    _
  $region27: #{rblock_forward.1} parent=0 // pred_check_branch
    %38 = sbr.rel (0) target = $region29
  $region28: #{rblock_forward.1} parent=0 // pred_region
    _
  $region29: #{rblock_forward.1} parent=0 // pred_fallthru
    _
  // Predicated region
  $region30: #{rblock_forward.1} parent=0 // pred_check
    _
  $region31: #{rblock_forward.1} parent=0 // pred_check_branch
    %40 = sbr.rel (0) target = $region33
  $region32: #{rblock_forward.1} parent=0 // pred_region
    _
  $region33: #{rblock_forward.1} parent=0 // pred_fallthru
    _
  // Predicated region
  $region34: #{rblock_forward.1} parent=0 // pred_check
    _
  $region35: #{rblock_forward.1} parent=0 // pred_check_branch
    %42 = sbr.rel (0) target = $region37
  $region36: #{rblock_forward.1} parent=0 // pred_region
    _
  $region37: #{rblock_forward.1} parent=0 // pred_fallthru
    _
  // Predicated region
  $region38: #{rblock_forward.1} parent=0 // pred_check
    _
  $region39: #{rblock_forward.1} parent=0 // pred_check_branch
    %44 = sbr.rel (0) target = $region41
  $region40: #{rblock_forward.1} parent=0 // pred_region
    _
  $region41: #{rblock_forward.1} parent=0 // pred_fallthru
    _
  // Predicated region
  $region42: #{rblock_forward.1} parent=0 // pred_check
    _
  $region43: #{rblock_forward.1} parent=0 // pred_check_branch
    %46 = sbr.rel (0) target = $region45
  $region44: #{rblock_forward.1} parent=0 // pred_region
    _
  $region45: #{rblock_forward.1} parent=0 // pred_fallthru
    _
  // Predicated region
  $region46: #{rblock_forward.1} parent=0 // pred_check
    _
  $region47: #{rblock_forward.1} parent=0 // pred_check_branch
    %48 = sbr.rel (0) target = $region49
  $region48: #{rblock_forward.1} parent=0 // pred_region
    _
  $region49: #{rblock_forward.1} parent=0 // pred_fallthru
    _
  // Predicated region
  $region50: #{rblock_forward.1} parent=0 // pred_check
    _
  $region51: #{rblock_forward.1} parent=0 // pred_check_branch
    %50 = sbr.rel (0) target = $region53
  $region52: #{rblock_forward.1} parent=0 // pred_region
    _
  $region53: #{rblock_forward.1} parent=0 // pred_fallthru
    _
  // Predicated region
  $region54: #{rblock_forward.1} parent=0 // pred_check
    _
  $region55: #{rblock_forward.1} parent=0 // pred_check_branch
    %52 = sbr.rel (0) target = $region57
  $region56: #{rblock_forward.1} parent=0 // pred_region
    _
  $region57: #{rblock_forward.1} parent=0 // pred_fallthru
    _
  // Predicated region
  $region58: #{rblock_forward.1} parent=0 // pred_check
    _
  $region59: #{rblock_forward.1} parent=0 // pred_check_branch
    %54 = sbr.rel (0) target = $region61
  $region60: #{rblock_forward.1} parent=0 // pred_region
    _
  $region61: #{rblock_forward.1} parent=0 // pred_fallthru
    _
  // Predicated region
  $region62: #{rblock_forward.1} parent=0 // pred_check
    _
  $region63: #{rblock_forward.1} parent=0 // pred_check_branch
    %56 = sbr.rel (0) target = $region65
  $region64: #{rblock_forward.1} parent=0 // pred_region
    _
  $region65: #{rblock_forward.1} parent=0 // pred_fallthru
    _
  // Predicated region
  $region66: #{rblock_forward.1} parent=0 // pred_check
    _
  $region67: #{rblock_forward.1} parent=0 // pred_check_branch
    %58 = sbr.rel (0) target = $region69
  $region68: #{rblock_forward.1} parent=0 // pred_region
    _
  $region69: #{rblock_forward.1} parent=0 // pred_fallthru
    _
  // Predicated region
  $region70: #{rblock_forward.1} parent=0 // pred_check
    _
  $region71: #{rblock_forward.1} parent=0 // pred_check_branch
    %60 = sbr.rel (0) target = $region73
  $region72: #{rblock_forward.1} parent=0 // pred_region
    _
  $region73: #{rblock_forward.1} parent=0 // pred_fallthru
    _
  // Predicated region
  $region74: #{rblock_forward.1} parent=0 // pred_check
    _
  $region75: #{rblock_forward.1} parent=0 // pred_check_branch
    %62 = sbr.rel (0) target = $region77
  $region76: #{rblock_forward.1} parent=0 // pred_region
    _
  $region77: #{rblock_forward.1} parent=0 // pred_fallthru
    _
  // Predicated region
  $region78: #{rblock_forward.1} parent=0 // pred_check
    _
  $region79: #{rblock_forward.1} parent=0 // pred_check_branch
    %64 = sbr.rel (0) target = $region81
  $region80: #{rblock_forward.1} parent=0 // pred_region
    _
  $region81: #{rblock_forward.1} parent=0 // pred_fallthru
    _
  %v65 = vld [vmem:[%s0] sm:$0xff]
  %v66 = vld [vmem:[%s0 + $0x8] sm:$0xff]
  %v67 = vld [vmem:[%s0 + $0x10] sm:$0xff]
  %v68 = vld [vmem:[%s0 + $0x18] sm:$0xff]
  %v69 = vadd.f32 %v65, %v66
  %v70 = vadd.f32 %v69, %v67
  %v71 = vadd.f32 %v70, %v68
  %72 = vadd.xlane.f32.xlu0 %v71
  %v73 = vpop.xlane.xlu0 %72
  %v74 = vrcp.pop 512.0
  %v75 = vmul.f32 %v73, %v74
  %v76 = vsub.f32 %v65, %v75
  %v77 = vsub.f32 %v66, %v75
  %v78 = vsub.f32 %v67, %v75
  %v79 = vsub.f32 %v68, %v75
  %v80 = vmul.f32 %v76, %v76
  %v81 = vmul.f32 %v77, %v77
  %v82 = vmul.f32 %v78, %v78
  %v83 = vmul.f32 %v79, %v79
  %v84 = vadd.f32 %v80, %v81
  %v85 = vadd.f32 %v84, %v82
  %v86 = vadd.f32 %v85, %v83
  %87 = vadd.xlane.f32.xlu0 %v86
  %v88 = vpop.xlane.xlu0 %87
  %v89 = vmul.f32 %v88, %v74
  %v90 = vld [vmem:[%s2] sm:$0xff]
  %v91 = vadd.f32 %v89, 1e-05
  %v92 = vrsqrt.pop %v91
  %v93 = vmul.f32 %v90, %v92
  %v94 = vld [vmem:[%s3] sm:$0xff]
  %v95 = vmul.f32 %v75, %v93
  %v96 = vsub.f32 %v94, %v95
  %98 = vset.pattern.permute.xlu0 0
  %99 = vperm.xlu0 %98, %v93
  %v100 = vpop.permute.xlu0 %99
  %v102 = vmul.f32 %v65, %v100
  %v103 = vmul.f32 %v66, %v100
  %v104 = vmul.f32 %v67, %v100
  %v105 = vmul.f32 %v68, %v100
  %107 = vset.pattern.permute.xlu0 0
  %108 = vperm.xlu0 %107, %v96
  %v109 = vpop.permute.xlu0 %108
  %v111 = vadd.f32 %v102, %v109
  %v112 = vadd.f32 %v103, %v109
  %v113 = vadd.f32 %v104, %v109
  %v114 = vadd.f32 %v105, %v109
  %v115 = vmax.f32 %v111, 0.0
  %v116 = vmax.f32 %v112, 0.0
  %v117 = vmax.f32 %v113, 0.0
  %v118 = vmax.f32 %v114, 0.0
  %119 = vrot.lane.b32.xlu0 %v115, 17
  %v120 = vpop.permute.xlu0 %119
  %121 = vrot.lane.b32.xlu0 %v116, 17
  %v122 = vpop.permute.xlu0 %121
  %123 = vrot.lane.b32.xlu0 %v117, 17
  %v124 = vpop.permute.xlu0 %123
  %125 = vrot.lane.b32.xlu0 %v118, 17
  %v126 = vpop.permute.xlu0 %125
  %v127 = vlaneseq
  %v128 = vand.u32 %v127, 127
  %vm129 = vcmp.lt.s32.totalorder %v128, 17
  %v130 = vsel %vm129, %v124, %v126
  %v131 = vsel %vm129, %v122, %v124
  %v132 = vsel %vm129, %v120, %v122
  %v133 = vsel %vm129, %v126, %v120
  %v134 = vld [vmem:[%s1] sm:$0xff]
  %v135 = vld [vmem:[%s1 + $0x8] sm:$0xff]
  %v136 = vld [vmem:[%s1 + $0x10] sm:$0xff]
  %v137 = vld [vmem:[%s1 + $0x18] sm:$0xff]
  %v138 = vmul.f32 %v133, %v134
  %v139 = vmul.f32 %v132, %v135
  %v140 = vmul.f32 %v131, %v136
  %v141 = vmul.f32 %v130, %v137
  %142 = vrot.lane.b32.xlu0 %v115, 16
  %v143 = vpop.permute.xlu0 %142
  %144 = vrot.lane.b32.xlu0 %v116, 16
  %v145 = vpop.permute.xlu0 %144
  %146 = vrot.lane.b32.xlu0 %v117, 16
  %v147 = vpop.permute.xlu0 %146
  %148 = vrot.lane.b32.xlu0 %v118, 16
  %v149 = vpop.permute.xlu0 %148
  %vm150 = vcmp.lt.s32.totalorder %v128, 16
  %v151 = vsel %vm150, %v147, %v149
  %v152 = vsel %vm150, %v145, %v147
  %v153 = vsel %vm150, %v143, %v145
  %v154 = vsel %vm150, %v149, %v143
  %s155 = scalar_lea.vmem %s1, 32
  %v156 = vld [vmem:[%s155] sm:$0xff]
  %v157 = vld [vmem:[%s155 + $0x8] sm:$0xff]
  %v158 = vld [vmem:[%s155 + $0x10] sm:$0xff]
  %v159 = vld [vmem:[%s155 + $0x18] sm:$0xff]
  %v160 = vmul.f32 %v154, %v156
  %v161 = vmul.f32 %v153, %v157
  %v162 = vmul.f32 %v152, %v158
  %v163 = vmul.f32 %v151, %v159
  %164 = vrot.lane.b32.xlu0 %v115, 15
  %v165 = vpop.permute.xlu0 %164
  %166 = vrot.lane.b32.xlu0 %v116, 15
  %v167 = vpop.permute.xlu0 %166
  %168 = vrot.lane.b32.xlu0 %v117, 15
  %v169 = vpop.permute.xlu0 %168
  %170 = vrot.lane.b32.xlu0 %v118, 15
  %v171 = vpop.permute.xlu0 %170
  %vm172 = vcmp.lt.s32.totalorder %v128, 15
  %v173 = vsel %vm172, %v169, %v171
  %v174 = vsel %vm172, %v167, %v169
  %v175 = vsel %vm172, %v165, %v167
  %v176 = vsel %vm172, %v171, %v165
  %s177 = scalar_lea.vmem %s1, 64
  %v178 = vld [vmem:[%s177] sm:$0xff]
  %v179 = vld [vmem:[%s177 + $0x8] sm:$0xff]
  %v180 = vld [vmem:[%s177 + $0x10] sm:$0xff]
  %v181 = vld [vmem:[%s177 + $0x18] sm:$0xff]
  %v182 = vmul.f32 %v176, %v178
  %v183 = vmul.f32 %v175, %v179
  %v184 = vmul.f32 %v174, %v180
  %v185 = vmul.f32 %v173, %v181
  %186 = vrot.lane.b32.xlu0 %v115, 1
  %v187 = vpop.permute.xlu0 %186
  %188 = vrot.lane.b32.xlu0 %v116, 1
  %v189 = vpop.permute.xlu0 %188
  %190 = vrot.lane.b32.xlu0 %v117, 1
  %v191 = vpop.permute.xlu0 %190
  %192 = vrot.lane.b32.xlu0 %v118, 1
  %v193 = vpop.permute.xlu0 %192
  %vm194 = vcmp.lt.s32.totalorder %v128, 1
  %v195 = vsel %vm194, %v191, %v193
  %v196 = vsel %vm194, %v189, %v191
  %v197 = vsel %vm194, %v187, %v189
  %v198 = vsel %vm194, %v193, %v187
  %s199 = scalar_lea.vmem %s1, 96
  %v200 = vld [vmem:[%s199] sm:$0xff]
  %v201 = vld [vmem:[%s199 + $0x8] sm:$0xff]
  %v202 = vld [vmem:[%s199 + $0x10] sm:$0xff]
  %v203 = vld [vmem:[%s199 + $0x18] sm:$0xff]
  %v204 = vmul.f32 %v198, %v200
  %v205 = vmul.f32 %v197, %v201
  %v206 = vmul.f32 %v196, %v202
  %v207 = vmul.f32 %v195, %v203
  %208 = vrot.lane.b32.xlu0 %v115, 127
  %v209 = vpop.permute.xlu0 %208
  %210 = vrot.lane.b32.xlu0 %v116, 127
  %v211 = vpop.permute.xlu0 %210
  %212 = vrot.lane.b32.xlu0 %v117, 127
  %v213 = vpop.permute.xlu0 %212
  %214 = vrot.lane.b32.xlu0 %v118, 127
  %v215 = vpop.permute.xlu0 %214
  %vm216 = vcmp.lt.s32.totalorder %v128, 127
  %v217 = vsel %vm216, %v213, %v215
  %v218 = vsel %vm216, %v211, %v213
  %v219 = vsel %vm216, %v209, %v211
  %v220 = vsel %vm216, %v215, %v209
  %s221 = scalar_lea.vmem %s1, 160
  %v222 = vld [vmem:[%s221] sm:$0xff]
  %v223 = vld [vmem:[%s221 + $0x8] sm:$0xff]
  %v224 = vld [vmem:[%s221 + $0x10] sm:$0xff]
  %v225 = vld [vmem:[%s221 + $0x18] sm:$0xff]
  %v226 = vmul.f32 %v219, %v222
  %v227 = vmul.f32 %v218, %v223
  %v228 = vmul.f32 %v217, %v224
  %v229 = vmul.f32 %v220, %v225
  %230 = vrot.lane.b32.xlu0 %v115, 113
  %v231 = vpop.permute.xlu0 %230
  %232 = vrot.lane.b32.xlu0 %v116, 113
  %v233 = vpop.permute.xlu0 %232
  %234 = vrot.lane.b32.xlu0 %v117, 113
  %v235 = vpop.permute.xlu0 %234
  %236 = vrot.lane.b32.xlu0 %v118, 113
  %v237 = vpop.permute.xlu0 %236
  %vm238 = vcmp.lt.s32.totalorder %v128, 113
  %v239 = vsel %vm238, %v235, %v237
  %v240 = vsel %vm238, %v233, %v235
  %v241 = vsel %vm238, %v231, %v233
  %v242 = vsel %vm238, %v237, %v231
  %s243 = scalar_lea.vmem %s1, 192
  %v244 = vld [vmem:[%s243] sm:$0xff]
  %v245 = vld [vmem:[%s243 + $0x8] sm:$0xff]
  %v246 = vld [vmem:[%s243 + $0x10] sm:$0xff]
  %v247 = vld [vmem:[%s243 + $0x18] sm:$0xff]
  %v248 = vmul.f32 %v241, %v244
  %v249 = vmul.f32 %v240, %v245
  %v250 = vmul.f32 %v239, %v246
  %v251 = vmul.f32 %v242, %v247
  %252 = vrot.lane.b32.xlu0 %v115, 112
  %v253 = vpop.permute.xlu0 %252
  %254 = vrot.lane.b32.xlu0 %v116, 112
  %v255 = vpop.permute.xlu0 %254
  %256 = vrot.lane.b32.xlu0 %v117, 112
  %v257 = vpop.permute.xlu0 %256
  %258 = vrot.lane.b32.xlu0 %v118, 112
  %v259 = vpop.permute.xlu0 %258
  %vm260 = vcmp.lt.s32.totalorder %v128, 112
  %v261 = vsel %vm260, %v257, %v259
  %v262 = vsel %vm260, %v255, %v257
  %v263 = vsel %vm260, %v253, %v255
  %v264 = vsel %vm260, %v259, %v253
  %s265 = scalar_lea.vmem %s1, 224
  %v266 = vld [vmem:[%s265] sm:$0xff]
  %v267 = vld [vmem:[%s265 + $0x8] sm:$0xff]
  %v268 = vld [vmem:[%s265 + $0x10] sm:$0xff]
  %v269 = vld [vmem:[%s265 + $0x18] sm:$0xff]
  %v270 = vmul.f32 %v263, %v266
  %v271 = vmul.f32 %v262, %v267
  %v272 = vmul.f32 %v261, %v268
  %v273 = vmul.f32 %v264, %v269
  %274 = vrot.lane.b32.xlu0 %v115, 111
  %v275 = vpop.permute.xlu0 %274
  %276 = vrot.lane.b32.xlu0 %v116, 111
  %v277 = vpop.permute.xlu0 %276
  %278 = vrot.lane.b32.xlu0 %v117, 111
  %v279 = vpop.permute.xlu0 %278
  %280 = vrot.lane.b32.xlu0 %v118, 111
  %v281 = vpop.permute.xlu0 %280
  %vm282 = vcmp.lt.s32.totalorder %v128, 111
  %v283 = vsel %vm282, %v279, %v281
  %v284 = vsel %vm282, %v277, %v279
  %v285 = vsel %vm282, %v275, %v277
  %v286 = vsel %vm282, %v281, %v275
  %s287 = scalar_lea.vmem %s1, 256
  %v288 = vld [vmem:[%s287] sm:$0xff]
  %v289 = vld [vmem:[%s287 + $0x8] sm:$0xff]
  %v290 = vld [vmem:[%s287 + $0x10] sm:$0xff]
  %v291 = vld [vmem:[%s287 + $0x18] sm:$0xff]
  %v292 = vmul.f32 %v285, %v288
  %v293 = vmul.f32 %v284, %v289
  %v294 = vmul.f32 %v283, %v290
  %v295 = vmul.f32 %v286, %v291
  %v296 = vld [vmem:[%s4] sm:$0xff]
  %v297 = vld [vmem:[%s5] sm:$0xff]
  %299 = vset.pattern.permute.xlu0 0
  %300 = vperm.xlu0 %299, %v297
  %v301 = vpop.permute.xlu0 %300
  %vm303 = vcmask 588800
  %v305 = vsel %vm303, %v296, 0
  %307 = vmatprep.subr.mxu0 %v139
  %308 = vmatpush1.msra.mxu0 %v138
  %309 = vmatprep.subr.mxu0 %v161
  %310 = vmatpush1.msra.mxu0 %v160
  %311 = vmatprep.subr.mxu0 %v183
  %312 = vmatpush1.msra.mxu0 %v182
  %313 = vmatprep.subr.mxu0 %v205
  %314 = vmatpush1.msra.mxu0 %v204
  %315 = vmatprep.subr.mxu0 %v116
  %316 = vmatpush1.msra.mxu0 %v115
  %317 = vmatprep.subr.mxu0 %v227
  %318 = vmatpush1.msra.mxu0 %v226
  %319 = vmatprep.subr.mxu0 %v249
  %320 = vmatpush1.msra.mxu0 %v248
  %321 = vmatprep.subr.mxu0 %v271
  %322 = vmatpush1.msra.mxu0 %v270
  %323 = vmatprep.subr.mxu0 %v293
  %324 = vmatpush1.msra.mxu0 %v292
  %325 = vmatprep.subr.mxu0 0.0
  %326 = vmatpush1.msra.mxu0 0.0
  %327 = vmatprep.subr.mxu0 0.0
  %328 = vmatpush1.msra.mxu0 0.0
  %329 = vmatprep.subr.mxu0 0.0
  %330 = vmatpush1.msra.mxu0 0.0
  %331 = vmatprep.subr.mxu0 0.0
  %332 = vmatpush1.msra.mxu0 0.0
  %333 = vmatprep.subr.mxu0 0.0
  %334 = vmatpush1.msra.mxu0 0.0
  %335 = vmatprep.subr.mxu0 0.0
  %336 = vmatpush1.msra.mxu0 0.0
  %337 = vmatprep.subr.mxu0 0.0
  %338 = vmatpush1.msra.mxu0 0.0
  %339 = vmatprep.subr.mxu0 0.0
  %340 = vmatpush1.msra.mxu0 0.0
  %341 = vmatprep.subr.mxu0 0.0
  %342 = vmatpush1.msra.mxu0 0.0
  %343 = vmatprep.subr.mxu0 0.0
  %344 = vmatpush1.msra.mxu0 0.0
  %345 = vmatprep.subr.mxu0 0.0
  %346 = vmatpush1.msra.mxu0 0.0
  %347 = vmatprep.subr.mxu0 0.0
  %348 = vmatpush1.msra.mxu0 0.0
  %349 = vmatprep.subr.mxu0 0.0
  %350 = vmatpush1.msra.mxu0 0.0
  %351 = vmatprep.subr.mxu0 0.0
  %352 = vmatpush1.msra.mxu0 0.0
  %353 = vmatprep.subr.mxu0 0.0
  %354 = vmatpush1.msra.mxu0 0.0
  %355 = vmatprep.subr.mxu0 0.0
  %356 = vmatpush1.msra.mxu0 0.0
  %357 = vmatprep.subr.mxu0 0.0
  %358 = vmatpush1.msra.mxu0 0.0
  %359 = vmatprep.subr.mxu0 0.0
  %360 = vmatpush1.msra.mxu0 0.0
  %361 = vmatprep.subr.mxu0 0.0
  %362 = vmatpush1.msra.mxu0 0.0
  %363 = vmatprep.subr.mxu0 0.0
  %364 = vmatpush1.msra.mxu0 0.0
  %365 = vmatprep.subr.mxu0 0.0
  %366 = vmatpush1.msra.mxu0 0.0
  %367 = vmatprep.subr.mxu0 0.0
  %368 = vmatpush1.msra.mxu0 0.0
  %369 = vmatprep.subr.mxu0 0.0
  %370 = vmatpush1.msra.mxu0 0.0
  %371 = vmatprep.mubr.f32.mxu0 0.0
  %372 = vmatmul.mubr.f32.gmra.mrb[0].mxu0 %v305
  %v373 = vpop.f32.mrb[0].mxu0
  %v374 = vadd.f32 %v301, %v373
  %v375 = vpop.f32.mrb[0].mxu0
  %v376 = vadd.f32 %v301, %v375
  %377 = vdwg.mxu0
  %378 = vmatprep.subr.mxu0 %v141
  %379 = vmatpush1.msra.mxu0 %v140
  %380 = vmatprep.subr.mxu0 %v163
  %381 = vmatpush1.msra.mxu0 %v162
  %382 = vmatprep.subr.mxu0 %v185
  %383 = vmatpush1.msra.mxu0 %v184
  %384 = vmatprep.subr.mxu0 %v207
  %385 = vmatpush1.msra.mxu0 %v206
  %386 = vmatprep.subr.mxu0 %v118
  %387 = vmatpush1.msra.mxu0 %v117
  %388 = vmatprep.subr.mxu0 %v229
  %389 = vmatpush1.msra.mxu0 %v228
  %390 = vmatprep.subr.mxu0 %v251
  %391 = vmatpush1.msra.mxu0 %v250
  %392 = vmatprep.subr.mxu0 %v273
  %393 = vmatpush1.msra.mxu0 %v272
  %394 = vmatprep.subr.mxu0 %v295
  %395 = vmatpush1.msra.mxu0 %v294
  %396 = vmatprep.subr.mxu0 0.0
  %397 = vmatpush1.msra.mxu0 0.0
  %398 = vmatprep.subr.mxu0 0.0
  %399 = vmatpush1.msra.mxu0 0.0
  %400 = vmatprep.subr.mxu0 0.0
  %401 = vmatpush1.msra.mxu0 0.0
  %402 = vmatprep.subr.mxu0 0.0
  %403 = vmatpush1.msra.mxu0 0.0
  %404 = vmatprep.subr.mxu0 0.0
  %405 = vmatpush1.msra.mxu0 0.0
  %406 = vmatprep.subr.mxu0 0.0
  %407 = vmatpush1.msra.mxu0 0.0
  %408 = vmatprep.subr.mxu0 0.0
  %409 = vmatpush1.msra.mxu0 0.0
  %410 = vmatprep.subr.mxu0 0.0
  %411 = vmatpush1.msra.mxu0 0.0
  %412 = vmatprep.subr.mxu0 0.0
  %413 = vmatpush1.msra.mxu0 0.0
  %414 = vmatprep.subr.mxu0 0.0
  %415 = vmatpush1.msra.mxu0 0.0
  %416 = vmatprep.subr.mxu0 0.0
  %417 = vmatpush1.msra.mxu0 0.0
  %418 = vmatprep.subr.mxu0 0.0
  %419 = vmatpush1.msra.mxu0 0.0
  %420 = vmatprep.subr.mxu0 0.0
  %421 = vmatpush1.msra.mxu0 0.0
  %422 = vmatprep.subr.mxu0 0.0
  %423 = vmatpush1.msra.mxu0 0.0
  %424 = vmatprep.subr.mxu0 0.0
  %425 = vmatpush1.msra.mxu0 0.0
  %426 = vmatprep.subr.mxu0 0.0
  %427 = vmatpush1.msra.mxu0 0.0
  %428 = vmatprep.subr.mxu0 0.0
  %429 = vmatpush1.msra.mxu0 0.0
  %430 = vmatprep.subr.mxu0 0.0
  %431 = vmatpush1.msra.mxu0 0.0
  %432 = vmatprep.subr.mxu0 0.0
  %433 = vmatpush1.msra.mxu0 0.0
  %434 = vmatprep.subr.mxu0 0.0
  %435 = vmatpush1.msra.mxu0 0.0
  %436 = vmatprep.subr.mxu0 0.0
  %437 = vmatpush1.msra.mxu0 0.0
  %438 = vmatprep.subr.mxu0 0.0
  %439 = vmatpush1.msra.mxu0 0.0
  %440 = vmatprep.subr.mxu0 0.0
  %441 = vmatpush1.msra.mxu0 0.0
  %442 = vmatprep.mubr.f32.mxu0 0.0
  %443 = vmatmul.mubr.f32.gmra.mrb[0].mxu0 %v305
  %v444 = vpop.f32.mrb[0].mxu0
  %v445 = vadd.f32 %v301, %v444
  %v446 = vpop.f32.mrb[0].mxu0
  %v447 = vadd.f32 %v301, %v446
  %448 = vdwg.mxu0
  %v449 = vadd.f32 %v374, %v376
  %v450 = vadd.f32 %v449, %v445
  %v451 = vadd.f32 %v450, %v447
  %452 = vadd.xlane.f32.xlu0 %v451
  %v453 = vpop.xlane.xlu0 %452
  %v454 = vmul.f32 %v453, %v74
  %v455 = vsub.f32 %v374, %v454
  %v456 = vsub.f32 %v376, %v454
  %v457 = vsub.f32 %v445, %v454
  %v458 = vsub.f32 %v447, %v454
  %v459 = vmul.f32 %v455, %v455
  %v460 = vmul.f32 %v456, %v456
  %v461 = vmul.f32 %v457, %v457
  %v462 = vmul.f32 %v458, %v458
  %v463 = vadd.f32 %v459, %v460
  %v464 = vadd.f32 %v463, %v461
  %v465 = vadd.f32 %v464, %v462
  %466 = vadd.xlane.f32.xlu0 %v465
  %v467 = vpop.xlane.xlu0 %466
  %v468 = vmul.f32 %v467, %v74
  %v469 = vld [vmem:[%s6] sm:$0xff]
  %v470 = vadd.f32 %v468, 1e-05
  %v471 = vrsqrt.pop %v470
  %v472 = vmul.f32 %v469, %v471
  %v473 = vld [vmem:[%s7] sm:$0xff]
  %v474 = vmul.f32 %v454, %v472
  %v475 = vsub.f32 %v473, %v474
  %477 = vset.pattern.permute.xlu0 0
  %478 = vperm.xlu0 %477, %v472
  %v479 = vpop.permute.xlu0 %478
  %v481 = vmul.f32 %v374, %v479
  %v482 = vmul.f32 %v376, %v479
  %v483 = vmul.f32 %v445, %v479
  %v484 = vmul.f32 %v447, %v479
  %486 = vset.pattern.permute.xlu0 0
  %487 = vperm.xlu0 %486, %v475
  %v488 = vpop.permute.xlu0 %487
  %v490 = vadd.f32 %v481, %v488
  %v491 = vadd.f32 %v482, %v488
  %v492 = vadd.f32 %v483, %v488
  %v493 = vadd.f32 %v484, %v488
  %v494 = vmax.f32 %v490, 0.0
  %v495 = vmax.f32 %v491, 0.0
  %v496 = vmax.f32 %v492, 0.0
  %v497 = vmax.f32 %v493, 0.0
  %498 = vrot.lane.b32.xlu0 %v494, 17
  %v499 = vpop.permute.xlu0 %498
  %500 = vrot.lane.b32.xlu0 %v495, 17
  %v501 = vpop.permute.xlu0 %500
  %502 = vrot.lane.b32.xlu0 %v496, 17
  %v503 = vpop.permute.xlu0 %502
  %504 = vrot.lane.b32.xlu0 %v497, 17
  %v505 = vpop.permute.xlu0 %504
  %v506 = vsel %vm129, %v503, %v505
  %v507 = vsel %vm129, %v501, %v503
  %v508 = vsel %vm129, %v499, %v501
  %v509 = vsel %vm129, %v505, %v499
  %v510 = vmul.f32 %v509, %v134
  %v511 = vmul.f32 %v508, %v135
  %v512 = vmul.f32 %v507, %v136
  %v513 = vmul.f32 %v506, %v137
  %514 = vrot.lane.b32.xlu0 %v494, 16
  %v515 = vpop.permute.xlu0 %514
  %516 = vrot.lane.b32.xlu0 %v495, 16
  %v517 = vpop.permute.xlu0 %516
  %518 = vrot.lane.b32.xlu0 %v496, 16
  %v519 = vpop.permute.xlu0 %518
  %520 = vrot.lane.b32.xlu0 %v497, 16
  %v521 = vpop.permute.xlu0 %520
  %v522 = vsel %vm150, %v519, %v521
  %v523 = vsel %vm150, %v517, %v519
  %v524 = vsel %vm150, %v515, %v517
  %v525 = vsel %vm150, %v521, %v515
  %v526 = vmul.f32 %v525, %v156
  %v527 = vmul.f32 %v524, %v157
  %v528 = vmul.f32 %v523, %v158
  %v529 = vmul.f32 %v522, %v159
  %530 = vrot.lane.b32.xlu0 %v494, 15
  %v531 = vpop.permute.xlu0 %530
  %532 = vrot.lane.b32.xlu0 %v495, 15
  %v533 = vpop.permute.xlu0 %532
  %534 = vrot.lane.b32.xlu0 %v496, 15
  %v535 = vpop.permute.xlu0 %534
  %536 = vrot.lane.b32.xlu0 %v497, 15
  %v537 = vpop.permute.xlu0 %536
  %v538 = vsel %vm172, %v535, %v537
  %v539 = vsel %vm172, %v533, %v535
  %v540 = vsel %vm172, %v531, %v533
  %v541 = vsel %vm172, %v537, %v531
  %v542 = vmul.f32 %v541, %v178
  %v543 = vmul.f32 %v540, %v179
  %v544 = vmul.f32 %v539, %v180
  %v545 = vmul.f32 %v538, %v181
  %546 = vrot.lane.b32.xlu0 %v494, 1
  %v547 = vpop.permute.xlu0 %546
  %548 = vrot.lane.b32.xlu0 %v495, 1
  %v549 = vpop.permute.xlu0 %548
  %550 = vrot.lane.b32.xlu0 %v496, 1
  %v551 = vpop.permute.xlu0 %550
  %552 = vrot.lane.b32.xlu0 %v497, 1
  %v553 = vpop.permute.xlu0 %552
  %v554 = vsel %vm194, %v551, %v553
  %v555 = vsel %vm194, %v549, %v551
  %v556 = vsel %vm194, %v547, %v549
  %v557 = vsel %vm194, %v553, %v547
  %v558 = vmul.f32 %v557, %v200
  %v559 = vmul.f32 %v556, %v201
  %v560 = vmul.f32 %v555, %v202
  %v561 = vmul.f32 %v554, %v203
  %562 = vrot.lane.b32.xlu0 %v494, 127
  %v563 = vpop.permute.xlu0 %562
  %564 = vrot.lane.b32.xlu0 %v495, 127
  %v565 = vpop.permute.xlu0 %564
  %566 = vrot.lane.b32.xlu0 %v496, 127
  %v567 = vpop.permute.xlu0 %566
  %568 = vrot.lane.b32.xlu0 %v497, 127
  %v569 = vpop.permute.xlu0 %568
  %v570 = vsel %vm216, %v567, %v569
  %v571 = vsel %vm216, %v565, %v567
  %v572 = vsel %vm216, %v563, %v565
  %v573 = vsel %vm216, %v569, %v563
  %v574 = vmul.f32 %v572, %v222
  %v575 = vmul.f32 %v571, %v223
  %v576 = vmul.f32 %v570, %v224
  %v577 = vmul.f32 %v573, %v225
  %578 = vrot.lane.b32.xlu0 %v494, 113
  %v579 = vpop.permute.xlu0 %578
  %580 = vrot.lane.b32.xlu0 %v495, 113
  %v581 = vpop.permute.xlu0 %580
  %582 = vrot.lane.b32.xlu0 %v496, 113
  %v583 = vpop.permute.xlu0 %582
  %584 = vrot.lane.b32.xlu0 %v497, 113
  %v585 = vpop.permute.xlu0 %584
  %v586 = vsel %vm238, %v583, %v585
  %v587 = vsel %vm238, %v581, %v583
  %v588 = vsel %vm238, %v579, %v581
  %v589 = vsel %vm238, %v585, %v579
  %v590 = vmul.f32 %v588, %v244
  %v591 = vmul.f32 %v587, %v245
  %v592 = vmul.f32 %v586, %v246
  %v593 = vmul.f32 %v589, %v247
  %594 = vrot.lane.b32.xlu0 %v494, 112
  %v595 = vpop.permute.xlu0 %594
  %596 = vrot.lane.b32.xlu0 %v495, 112
  %v597 = vpop.permute.xlu0 %596
  %598 = vrot.lane.b32.xlu0 %v496, 112
  %v599 = vpop.permute.xlu0 %598
  %600 = vrot.lane.b32.xlu0 %v497, 112
  %v601 = vpop.permute.xlu0 %600
  %v602 = vsel %vm260, %v599, %v601
  %v603 = vsel %vm260, %v597, %v599
  %v604 = vsel %vm260, %v595, %v597
  %v605 = vsel %vm260, %v601, %v595
  %v606 = vmul.f32 %v604, %v266
  %v607 = vmul.f32 %v603, %v267
  %v608 = vmul.f32 %v602, %v268
  %v609 = vmul.f32 %v605, %v269
  %610 = vrot.lane.b32.xlu0 %v494, 111
  %v611 = vpop.permute.xlu0 %610
  %612 = vrot.lane.b32.xlu0 %v495, 111
  %v613 = vpop.permute.xlu0 %612
  %614 = vrot.lane.b32.xlu0 %v496, 111
  %v615 = vpop.permute.xlu0 %614
  %616 = vrot.lane.b32.xlu0 %v497, 111
  %v617 = vpop.permute.xlu0 %616
  %v618 = vsel %vm282, %v615, %v617
  %v619 = vsel %vm282, %v613, %v615
  %v620 = vsel %vm282, %v611, %v613
  %v621 = vsel %vm282, %v617, %v611
  %v622 = vmul.f32 %v620, %v288
  %v623 = vmul.f32 %v619, %v289
  %v624 = vmul.f32 %v618, %v290
  %v625 = vmul.f32 %v621, %v291
  %v626 = vld [vmem:[%s8] sm:$0xff]
  %v627 = vld [vmem:[%s9] sm:$0xff]
  %629 = vset.pattern.permute.xlu0 0
  %630 = vperm.xlu0 %629, %v627
  %v631 = vpop.permute.xlu0 %630
  %v634 = vsel %vm303, %v626, 0
  %636 = vmatprep.subr.mxu0 %v511
  %637 = vmatpush1.msra.mxu0 %v510
  %638 = vmatprep.subr.mxu0 %v527
  %639 = vmatpush1.msra.mxu0 %v526
  %640 = vmatprep.subr.mxu0 %v543
  %641 = vmatpush1.msra.mxu0 %v542
  %642 = vmatprep.subr.mxu0 %v559
  %643 = vmatpush1.msra.mxu0 %v558
  %644 = vmatprep.subr.mxu0 %v495
  %645 = vmatpush1.msra.mxu0 %v494
  %646 = vmatprep.subr.mxu0 %v575
  %647 = vmatpush1.msra.mxu0 %v574
  %648 = vmatprep.subr.mxu0 %v591
  %649 = vmatpush1.msra.mxu0 %v590
  %650 = vmatprep.subr.mxu0 %v607
  %651 = vmatpush1.msra.mxu0 %v606
  %652 = vmatprep.subr.mxu0 %v623
  %653 = vmatpush1.msra.mxu0 %v622
  %654 = vmatprep.subr.mxu0 0.0
  %655 = vmatpush1.msra.mxu0 0.0
  %656 = vmatprep.subr.mxu0 0.0
  %657 = vmatpush1.msra.mxu0 0.0
  %658 = vmatprep.subr.mxu0 0.0
  %659 = vmatpush1.msra.mxu0 0.0
  %660 = vmatprep.subr.mxu0 0.0
  %661 = vmatpush1.msra.mxu0 0.0
  %662 = vmatprep.subr.mxu0 0.0
  %663 = vmatpush1.msra.mxu0 0.0
  %664 = vmatprep.subr.mxu0 0.0
  %665 = vmatpush1.msra.mxu0 0.0
  %666 = vmatprep.subr.mxu0 0.0
  %667 = vmatpush1.msra.mxu0 0.0
  %668 = vmatprep.subr.mxu0 0.0
  %669 = vmatpush1.msra.mxu0 0.0
  %670 = vmatprep.subr.mxu0 0.0
  %671 = vmatpush1.msra.mxu0 0.0
  %672 = vmatprep.subr.mxu0 0.0
  %673 = vmatpush1.msra.mxu0 0.0
  %674 = vmatprep.subr.mxu0 0.0
  %675 = vmatpush1.msra.mxu0 0.0
  %676 = vmatprep.subr.mxu0 0.0
  %677 = vmatpush1.msra.mxu0 0.0
  %678 = vmatprep.subr.mxu0 0.0
  %679 = vmatpush1.msra.mxu0 0.0
  %680 = vmatprep.subr.mxu0 0.0
  %681 = vmatpush1.msra.mxu0 0.0
  %682 = vmatprep.subr.mxu0 0.0
  %683 = vmatpush1.msra.mxu0 0.0
  %684 = vmatprep.subr.mxu0 0.0
  %685 = vmatpush1.msra.mxu0 0.0
  %686 = vmatprep.subr.mxu0 0.0
  %687 = vmatpush1.msra.mxu0 0.0
  %688 = vmatprep.subr.mxu0 0.0
  %689 = vmatpush1.msra.mxu0 0.0
  %690 = vmatprep.subr.mxu0 0.0
  %691 = vmatpush1.msra.mxu0 0.0
  %692 = vmatprep.subr.mxu0 0.0
  %693 = vmatpush1.msra.mxu0 0.0
  %694 = vmatprep.subr.mxu0 0.0
  %695 = vmatpush1.msra.mxu0 0.0
  %696 = vmatprep.subr.mxu0 0.0
  %697 = vmatpush1.msra.mxu0 0.0
  %698 = vmatprep.subr.mxu0 0.0
  %699 = vmatpush1.msra.mxu0 0.0
  %700 = vmatprep.mubr.f32.mxu0 0.0
  %701 = vmatmul.mubr.f32.gmra.mrb[0].mxu0 %v634
  %v702 = vpop.f32.mrb[0].mxu0
  %v703 = vadd.f32 %v631, %v702
  %v704 = vpop.f32.mrb[0].mxu0
  %v705 = vadd.f32 %v631, %v704
  %706 = vdwg.mxu0
  %707 = vmatprep.subr.mxu0 %v513
  %708 = vmatpush1.msra.mxu0 %v512
  %709 = vmatprep.subr.mxu0 %v529
  %710 = vmatpush1.msra.mxu0 %v528
  %711 = vmatprep.subr.mxu0 %v545
  %712 = vmatpush1.msra.mxu0 %v544
  %713 = vmatprep.subr.mxu0 %v561
  %714 = vmatpush1.msra.mxu0 %v560
  %715 = vmatprep.subr.mxu0 %v497
  %716 = vmatpush1.msra.mxu0 %v496
  %717 = vmatprep.subr.mxu0 %v577
  %718 = vmatpush1.msra.mxu0 %v576
  %719 = vmatprep.subr.mxu0 %v593
  %720 = vmatpush1.msra.mxu0 %v592
  %721 = vmatprep.subr.mxu0 %v609
  %722 = vmatpush1.msra.mxu0 %v608
  %723 = vmatprep.subr.mxu0 %v625
  %724 = vmatpush1.msra.mxu0 %v624
  %725 = vmatprep.subr.mxu0 0.0
  %726 = vmatpush1.msra.mxu0 0.0
  %727 = vmatprep.subr.mxu0 0.0
  %728 = vmatpush1.msra.mxu0 0.0
  %729 = vmatprep.subr.mxu0 0.0
  %730 = vmatpush1.msra.mxu0 0.0
  %731 = vmatprep.subr.mxu0 0.0
  %732 = vmatpush1.msra.mxu0 0.0
  %733 = vmatprep.subr.mxu0 0.0
  %734 = vmatpush1.msra.mxu0 0.0
  %735 = vmatprep.subr.mxu0 0.0
  %736 = vmatpush1.msra.mxu0 0.0
  %737 = vmatprep.subr.mxu0 0.0
  %738 = vmatpush1.msra.mxu0 0.0
  %739 = vmatprep.subr.mxu0 0.0
  %740 = vmatpush1.msra.mxu0 0.0
  %741 = vmatprep.subr.mxu0 0.0
  %742 = vmatpush1.msra.mxu0 0.0
  %743 = vmatprep.subr.mxu0 0.0
  %744 = vmatpush1.msra.mxu0 0.0
  %745 = vmatprep.subr.mxu0 0.0
  %746 = vmatpush1.msra.mxu0 0.0
  %747 = vmatprep.subr.mxu0 0.0
  %748 = vmatpush1.msra.mxu0 0.0
  %749 = vmatprep.subr.mxu0 0.0
  %750 = vmatpush1.msra.mxu0 0.0
  %751 = vmatprep.subr.mxu0 0.0
  %752 = vmatpush1.msra.mxu0 0.0
  %753 = vmatprep.subr.mxu0 0.0
  %754 = vmatpush1.msra.mxu0 0.0
  %755 = vmatprep.subr.mxu0 0.0
  %756 = vmatpush1.msra.mxu0 0.0
  %757 = vmatprep.subr.mxu0 0.0
  %758 = vmatpush1.msra.mxu0 0.0
  %759 = vmatprep.subr.mxu0 0.0
  %760 = vmatpush1.msra.mxu0 0.0
  %761 = vmatprep.subr.mxu0 0.0
  %762 = vmatpush1.msra.mxu0 0.0
  %763 = vmatprep.subr.mxu0 0.0
  %764 = vmatpush1.msra.mxu0 0.0
  %765 = vmatprep.subr.mxu0 0.0
  %766 = vmatpush1.msra.mxu0 0.0
  %767 = vmatprep.subr.mxu0 0.0
  %768 = vmatpush1.msra.mxu0 0.0
  %769 = vmatprep.subr.mxu0 0.0
  %770 = vmatpush1.msra.mxu0 0.0
  %771 = vmatprep.mubr.f32.mxu0 0.0
  %772 = vmatmul.mubr.f32.gmra.mrb[0].mxu0 %v634
  %v773 = vpop.f32.mrb[0].mxu0
  %v774 = vadd.f32 %v631, %v773
  %v775 = vpop.f32.mrb[0].mxu0
  %v776 = vadd.f32 %v631, %v775
  %777 = vdwg.mxu0
  %v778 = vadd.f32 %v703, %v65
  %v779 = vadd.f32 %v705, %v66
  %v780 = vadd.f32 %v774, %v67
  %v781 = vadd.f32 %v776, %v68
  %v782 = vadd.f32 %v778, %v779
  %v783 = vadd.f32 %v782, %v780
  %v784 = vadd.f32 %v783, %v781
  %785 = vadd.xlane.f32.xlu0 %v784
  %v786 = vpop.xlane.xlu0 %785
  %v787 = vmul.f32 %v786, %v74
  %v788 = vsub.f32 %v778, %v787
  %v789 = vsub.f32 %v779, %v787
  %v790 = vsub.f32 %v780, %v787
  %v791 = vsub.f32 %v781, %v787
  %v792 = vmul.f32 %v788, %v788
  %v793 = vmul.f32 %v789, %v789
  %v794 = vmul.f32 %v790, %v790
  %v795 = vmul.f32 %v791, %v791
  %v796 = vadd.f32 %v792, %v793
  %v797 = vadd.f32 %v796, %v794
  %v798 = vadd.f32 %v797, %v795
  %799 = vadd.xlane.f32.xlu0 %v798
  %v800 = vpop.xlane.xlu0 %799
  %v801 = vmul.f32 %v800, %v74
  %v802 = vld [vmem:[%s10] sm:$0xff]
  %v803 = vadd.f32 %v801, 1e-05
  %v804 = vrsqrt.pop %v803
  %v805 = vmul.f32 %v802, %v804
  %v806 = vld [vmem:[%s11] sm:$0xff]
  %v807 = vmul.f32 %v787, %v805
  %v808 = vsub.f32 %v806, %v807
  %810 = vset.pattern.permute.xlu0 0
  %811 = vperm.xlu0 %810, %v805
  %v812 = vpop.permute.xlu0 %811
  %v814 = vmul.f32 %v778, %v812
  %v815 = vmul.f32 %v779, %v812
  %v816 = vmul.f32 %v780, %v812
  %v817 = vmul.f32 %v781, %v812
  %819 = vset.pattern.permute.xlu0 0
  %820 = vperm.xlu0 %819, %v808
  %v821 = vpop.permute.xlu0 %820
  %v823 = vadd.f32 %v814, %v821
  %v824 = vadd.f32 %v815, %v821
  %v825 = vadd.f32 %v816, %v821
  %v826 = vadd.f32 %v817, %v821
  %v827 = vmax.f32 %v823, 0.0
  %v828 = vmax.f32 %v824, 0.0
  %v829 = vmax.f32 %v825, 0.0
  %v830 = vmax.f32 %v826, 0.0
  %831 = vrot.lane.b32.xlu0 %v827, 17
  %v832 = vpop.permute.xlu0 %831
  %833 = vrot.lane.b32.xlu0 %v828, 17
  %v834 = vpop.permute.xlu0 %833
  %835 = vrot.lane.b32.xlu0 %v829, 17
  %v836 = vpop.permute.xlu0 %835
  %837 = vrot.lane.b32.xlu0 %v830, 17
  %v838 = vpop.permute.xlu0 %837
  %v839 = vsel %vm129, %v836, %v838
  %v840 = vsel %vm129, %v834, %v836
  %v841 = vsel %vm129, %v832, %v834
  %v842 = vsel %vm129, %v838, %v832
  %v843 = vmul.f32 %v842, %v134
  %v844 = vmul.f32 %v841, %v135
  %v845 = vmul.f32 %v840, %v136
  %v846 = vmul.f32 %v839, %v137
  %847 = vrot.lane.b32.xlu0 %v827, 16
  %v848 = vpop.permute.xlu0 %847
  %849 = vrot.lane.b32.xlu0 %v828, 16
  %v850 = vpop.permute.xlu0 %849
  %851 = vrot.lane.b32.xlu0 %v829, 16
  %v852 = vpop.permute.xlu0 %851
  %853 = vrot.lane.b32.xlu0 %v830, 16
  %v854 = vpop.permute.xlu0 %853
  %v855 = vsel %vm150, %v852, %v854
  %v856 = vsel %vm150, %v850, %v852
  %v857 = vsel %vm150, %v848, %v850
  %v858 = vsel %vm150, %v854, %v848
  %v859 = vmul.f32 %v858, %v156
  %v860 = vmul.f32 %v857, %v157
  %v861 = vmul.f32 %v856, %v158
  %v862 = vmul.f32 %v855, %v159
  %863 = vrot.lane.b32.xlu0 %v827, 15
  %v864 = vpop.permute.xlu0 %863
  %865 = vrot.lane.b32.xlu0 %v828, 15
  %v866 = vpop.permute.xlu0 %865
  %867 = vrot.lane.b32.xlu0 %v829, 15
  %v868 = vpop.permute.xlu0 %867
  %869 = vrot.lane.b32.xlu0 %v830, 15
  %v870 = vpop.permute.xlu0 %869
  %v871 = vsel %vm172, %v868, %v870
  %v872 = vsel %vm172, %v866, %v868
  %v873 = vsel %vm172, %v864, %v866
  %v874 = vsel %vm172, %v870, %v864
  %v875 = vmul.f32 %v874, %v178
  %v876 = vmul.f32 %v873, %v179
  %v877 = vmul.f32 %v872, %v180
  %v878 = vmul.f32 %v871, %v181
  %879 = vrot.lane.b32.xlu0 %v827, 1
  %v880 = vpop.permute.xlu0 %879
  %881 = vrot.lane.b32.xlu0 %v828, 1
  %v882 = vpop.permute.xlu0 %881
  %883 = vrot.lane.b32.xlu0 %v829, 1
  %v884 = vpop.permute.xlu0 %883
  %885 = vrot.lane.b32.xlu0 %v830, 1
  %v886 = vpop.permute.xlu0 %885
  %v887 = vsel %vm194, %v884, %v886
  %v888 = vsel %vm194, %v882, %v884
  %v889 = vsel %vm194, %v880, %v882
  %v890 = vsel %vm194, %v886, %v880
  %v891 = vmul.f32 %v890, %v200
  %v892 = vmul.f32 %v889, %v201
  %v893 = vmul.f32 %v888, %v202
  %v894 = vmul.f32 %v887, %v203
  %895 = vrot.lane.b32.xlu0 %v827, 127
  %v896 = vpop.permute.xlu0 %895
  %897 = vrot.lane.b32.xlu0 %v828, 127
  %v898 = vpop.permute.xlu0 %897
  %899 = vrot.lane.b32.xlu0 %v829, 127
  %v900 = vpop.permute.xlu0 %899
  %901 = vrot.lane.b32.xlu0 %v830, 127
  %v902 = vpop.permute.xlu0 %901
  %v903 = vsel %vm216, %v900, %v902
  %v904 = vsel %vm216, %v898, %v900
  %v905 = vsel %vm216, %v896, %v898
  %v906 = vsel %vm216, %v902, %v896
  %v907 = vmul.f32 %v905, %v222
  %v908 = vmul.f32 %v904, %v223
  %v909 = vmul.f32 %v903, %v224
  %v910 = vmul.f32 %v906, %v225
  %911 = vrot.lane.b32.xlu0 %v827, 113
  %v912 = vpop.permute.xlu0 %911
  %913 = vrot.lane.b32.xlu0 %v828, 113
  %v914 = vpop.permute.xlu0 %913
  %915 = vrot.lane.b32.xlu0 %v829, 113
  %v916 = vpop.permute.xlu0 %915
  %917 = vrot.lane.b32.xlu0 %v830, 113
  %v918 = vpop.permute.xlu0 %917
  %v919 = vsel %vm238, %v916, %v918
  %v920 = vsel %vm238, %v914, %v916
  %v921 = vsel %vm238, %v912, %v914
  %v922 = vsel %vm238, %v918, %v912
  %v923 = vmul.f32 %v921, %v244
  %v924 = vmul.f32 %v920, %v245
  %v925 = vmul.f32 %v919, %v246
  %v926 = vmul.f32 %v922, %v247
  %927 = vrot.lane.b32.xlu0 %v827, 112
  %v928 = vpop.permute.xlu0 %927
  %929 = vrot.lane.b32.xlu0 %v828, 112
  %v930 = vpop.permute.xlu0 %929
  %931 = vrot.lane.b32.xlu0 %v829, 112
  %v932 = vpop.permute.xlu0 %931
  %933 = vrot.lane.b32.xlu0 %v830, 112
  %v934 = vpop.permute.xlu0 %933
  %v935 = vsel %vm260, %v932, %v934
  %v936 = vsel %vm260, %v930, %v932
  %v937 = vsel %vm260, %v928, %v930
  %v938 = vsel %vm260, %v934, %v928
  %v939 = vmul.f32 %v937, %v266
  %v940 = vmul.f32 %v936, %v267
  %v941 = vmul.f32 %v935, %v268
  %v942 = vmul.f32 %v938, %v269
  %943 = vrot.lane.b32.xlu0 %v827, 111
  %v944 = vpop.permute.xlu0 %943
  %945 = vrot.lane.b32.xlu0 %v828, 111
  %v946 = vpop.permute.xlu0 %945
  %947 = vrot.lane.b32.xlu0 %v829, 111
  %v948 = vpop.permute.xlu0 %947
  %949 = vrot.lane.b32.xlu0 %v830, 111
  %v950 = vpop.permute.xlu0 %949
  %v951 = vsel %vm282, %v948, %v950
  %v952 = vsel %vm282, %v946, %v948
  %v953 = vsel %vm282, %v944, %v946
  %v954 = vsel %vm282, %v950, %v944
  %v955 = vmul.f32 %v953, %v288
  %v956 = vmul.f32 %v952, %v289
  %v957 = vmul.f32 %v951, %v290
  %v958 = vmul.f32 %v954, %v291
  %v959 = vld [vmem:[%s12] sm:$0xff]
  %v960 = vld [vmem:[%s13] sm:$0xff]
  %962 = vset.pattern.permute.xlu0 0
  %963 = vperm.xlu0 %962, %v960
  %v964 = vpop.permute.xlu0 %963
  %v967 = vsel %vm303, %v959, 0
  %969 = vmatprep.subr.mxu0 %v844
  %970 = vmatpush1.msra.mxu0 %v843
  %971 = vmatprep.subr.mxu0 %v860
  %972 = vmatpush1.msra.mxu0 %v859
  %973 = vmatprep.subr.mxu0 %v876
  %974 = vmatpush1.msra.mxu0 %v875
  %975 = vmatprep.subr.mxu0 %v892
  %976 = vmatpush1.msra.mxu0 %v891
  %977 = vmatprep.subr.mxu0 %v828
  %978 = vmatpush1.msra.mxu0 %v827
  %979 = vmatprep.subr.mxu0 %v908
  %980 = vmatpush1.msra.mxu0 %v907
  %981 = vmatprep.subr.mxu0 %v924
  %982 = vmatpush1.msra.mxu0 %v923
  %983 = vmatprep.subr.mxu0 %v940
  %984 = vmatpush1.msra.mxu0 %v939
  %985 = vmatprep.subr.mxu0 %v956
  %986 = vmatpush1.msra.mxu0 %v955
  %987 = vmatprep.subr.mxu0 0.0
  %988 = vmatpush1.msra.mxu0 0.0
  %989 = vmatprep.subr.mxu0 0.0
  %990 = vmatpush1.msra.mxu0 0.0
  %991 = vmatprep.subr.mxu0 0.0
  %992 = vmatpush1.msra.mxu0 0.0
  %993 = vmatprep.subr.mxu0 0.0
  %994 = vmatpush1.msra.mxu0 0.0
  %995 = vmatprep.subr.mxu0 0.0
  %996 = vmatpush1.msra.mxu0 0.0
  %997 = vmatprep.subr.mxu0 0.0
  %998 = vmatpush1.msra.mxu0 0.0
  %999 = vmatprep.subr.mxu0 0.0
  %1000 = vmatpush1.msra.mxu0 0.0
  %1001 = vmatprep.subr.mxu0 0.0
  %1002 = vmatpush1.msra.mxu0 0.0
  %1003 = vmatprep.subr.mxu0 0.0
  %1004 = vmatpush1.msra.mxu0 0.0
  %1005 = vmatprep.subr.mxu0 0.0
  %1006 = vmatpush1.msra.mxu0 0.0
  %1007 = vmatprep.subr.mxu0 0.0
  %1008 = vmatpush1.msra.mxu0 0.0
  %1009 = vmatprep.subr.mxu0 0.0
  %1010 = vmatpush1.msra.mxu0 0.0
  %1011 = vmatprep.subr.mxu0 0.0
  %1012 = vmatpush1.msra.mxu0 0.0
  %1013 = vmatprep.subr.mxu0 0.0
  %1014 = vmatpush1.msra.mxu0 0.0
  %1015 = vmatprep.subr.mxu0 0.0
  %1016 = vmatpush1.msra.mxu0 0.0
  %1017 = vmatprep.subr.mxu0 0.0
  %1018 = vmatpush1.msra.mxu0 0.0
  %1019 = vmatprep.subr.mxu0 0.0
  %1020 = vmatpush1.msra.mxu0 0.0
  %1021 = vmatprep.subr.mxu0 0.0
  %1022 = vmatpush1.msra.mxu0 0.0
  %1023 = vmatprep.subr.mxu0 0.0
  %1024 = vmatpush1.msra.mxu0 0.0
  %1025 = vmatprep.subr.mxu0 0.0
  %1026 = vmatpush1.msra.mxu0 0.0
  %1027 = vmatprep.subr.mxu0 0.0
  %1028 = vmatpush1.msra.mxu0 0.0
  %1029 = vmatprep.subr.mxu0 0.0
  %1030 = vmatpush1.msra.mxu0 0.0
  %1031 = vmatprep.subr.mxu0 0.0
  %1032 = vmatpush1.msra.mxu0 0.0
  %1033 = vmatprep.mubr.f32.mxu0 0.0
  %1034 = vmatmul.mubr.f32.gmra.mrb[0].mxu0 %v967
  %v1035 = vpop.f32.mrb[0].mxu0
  %v1036 = vadd.f32 %v964, %v1035
  %v1037 = vpop.f32.mrb[0].mxu0
  %v1038 = vadd.f32 %v964, %v1037
  %1039 = vdwg.mxu0
  %1040 = vmatprep.subr.mxu0 %v846
  %1041 = vmatpush1.msra.mxu0 %v845
  %1042 = vmatprep.subr.mxu0 %v862
  %1043 = vmatpush1.msra.mxu0 %v861
  %1044 = vmatprep.subr.mxu0 %v878
  %1045 = vmatpush1.msra.mxu0 %v877
  %1046 = vmatprep.subr.mxu0 %v894
  %1047 = vmatpush1.msra.mxu0 %v893
  %1048 = vmatprep.subr.mxu0 %v830
  %1049 = vmatpush1.msra.mxu0 %v829
  %1050 = vmatprep.subr.mxu0 %v910
  %1051 = vmatpush1.msra.mxu0 %v909
  %1052 = vmatprep.subr.mxu0 %v926
  %1053 = vmatpush1.msra.mxu0 %v925
  %1054 = vmatprep.subr.mxu0 %v942
  %1055 = vmatpush1.msra.mxu0 %v941
  %1056 = vmatprep.subr.mxu0 %v958
  %1057 = vmatpush1.msra.mxu0 %v957
  %1058 = vmatprep.subr.mxu0 0.0
  %1059 = vmatpush1.msra.mxu0 0.0
  %1060 = vmatprep.subr.mxu0 0.0
  %1061 = vmatpush1.msra.mxu0 0.0
  %1062 = vmatprep.subr.mxu0 0.0
  %1063 = vmatpush1.msra.mxu0 0.0
  %1064 = vmatprep.subr.mxu0 0.0
  %1065 = vmatpush1.msra.mxu0 0.0
  %1066 = vmatprep.subr.mxu0 0.0
  %1067 = vmatpush1.msra.mxu0 0.0
  %1068 = vmatprep.subr.mxu0 0.0
  %1069 = vmatpush1.msra.mxu0 0.0
  %1070 = vmatprep.subr.mxu0 0.0
  %1071 = vmatpush1.msra.mxu0 0.0
  %1072 = vmatprep.subr.mxu0 0.0
  %1073 = vmatpush1.msra.mxu0 0.0
  %1074 = vmatprep.subr.mxu0 0.0
  %1075 = vmatpush1.msra.mxu0 0.0
  %1076 = vmatprep.subr.mxu0 0.0
  %1077 = vmatpush1.msra.mxu0 0.0
  %1078 = vmatprep.subr.mxu0 0.0
  %1079 = vmatpush1.msra.mxu0 0.0
  %1080 = vmatprep.subr.mxu0 0.0
  %1081 = vmatpush1.msra.mxu0 0.0
  %1082 = vmatprep.subr.mxu0 0.0
  %1083 = vmatpush1.msra.mxu0 0.0
  %1084 = vmatprep.subr.mxu0 0.0
  %1085 = vmatpush1.msra.mxu0 0.0
  %1086 = vmatprep.subr.mxu0 0.0
  %1087 = vmatpush1.msra.mxu0 0.0
  %1088 = vmatprep.subr.mxu0 0.0
  %1089 = vmatpush1.msra.mxu0 0.0
  %1090 = vmatprep.subr.mxu0 0.0
  %1091 = vmatpush1.msra.mxu0 0.0
  %1092 = vmatprep.subr.mxu0 0.0
  %1093 = vmatpush1.msra.mxu0 0.0
  %1094 = vmatprep.subr.mxu0 0.0
  %1095 = vmatpush1.msra.mxu0 0.0
  %1096 = vmatprep.subr.mxu0 0.0
  %1097 = vmatpush1.msra.mxu0 0.0
  %1098 = vmatprep.subr.mxu0 0.0
  %1099 = vmatpush1.msra.mxu0 0.0
  %1100 = vmatprep.subr.mxu0 0.0
  %1101 = vmatpush1.msra.mxu0 0.0
  %1102 = vmatprep.subr.mxu0 0.0
  %1103 = vmatpush1.msra.mxu0 0.0
  %1104 = vmatprep.mubr.f32.mxu0 0.0
  %1105 = vmatmul.mubr.f32.gmra.mrb[0].mxu0 %v967
  %v1106 = vpop.f32.mrb[0].mxu0
  %v1107 = vadd.f32 %v964, %v1106
  %v1108 = vpop.f32.mrb[0].mxu0
  %v1109 = vadd.f32 %v964, %v1108
  %1110 = vdwg.mxu0
  %v1111 = vadd.f32 %v1036, %v1038
  %v1112 = vadd.f32 %v1111, %v1107
  %v1113 = vadd.f32 %v1112, %v1109
  %1114 = vadd.xlane.f32.xlu0 %v1113
  %v1115 = vpop.xlane.xlu0 %1114
  %v1116 = vmul.f32 %v1115, %v74
  %v1117 = vsub.f32 %v1036, %v1116
  %v1118 = vsub.f32 %v1038, %v1116
  %v1119 = vsub.f32 %v1107, %v1116
  %v1120 = vsub.f32 %v1109, %v1116
  %v1121 = vmul.f32 %v1117, %v1117
  %v1122 = vmul.f32 %v1118, %v1118
  %v1123 = vmul.f32 %v1119, %v1119
  %v1124 = vmul.f32 %v1120, %v1120
  %v1125 = vadd.f32 %v1121, %v1122
  %v1126 = vadd.f32 %v1125, %v1123
  %v1127 = vadd.f32 %v1126, %v1124
  %1128 = vadd.xlane.f32.xlu0 %v1127
  %v1129 = vpop.xlane.xlu0 %1128
  %v1130 = vmul.f32 %v1129, %v74
  %v1131 = vld [vmem:[%s14] sm:$0xff]
  %v1132 = vadd.f32 %v1130, 1e-05
  %v1133 = vrsqrt.pop %v1132
  %v1134 = vmul.f32 %v1131, %v1133
  %v1135 = vld [vmem:[%s15] sm:$0xff]
  %v1136 = vmul.f32 %v1116, %v1134
  %v1137 = vsub.f32 %v1135, %v1136
  %1139 = vset.pattern.permute.xlu0 0
  %1140 = vperm.xlu0 %1139, %v1134
  %v1141 = vpop.permute.xlu0 %1140
  %v1143 = vmul.f32 %v1036, %v1141
  %v1144 = vmul.f32 %v1038, %v1141
  %v1145 = vmul.f32 %v1107, %v1141
  %v1146 = vmul.f32 %v1109, %v1141
  %1148 = vset.pattern.permute.xlu0 0
  %1149 = vperm.xlu0 %1148, %v1137
  %v1150 = vpop.permute.xlu0 %1149
  %v1152 = vadd.f32 %v1143, %v1150
  %v1153 = vadd.f32 %v1144, %v1150
  %v1154 = vadd.f32 %v1145, %v1150
  %v1155 = vadd.f32 %v1146, %v1150
  %v1156 = vmax.f32 %v1152, 0.0
  %v1157 = vmax.f32 %v1153, 0.0
  %v1158 = vmax.f32 %v1154, 0.0
  %v1159 = vmax.f32 %v1155, 0.0
  %1160 = vrot.lane.b32.xlu0 %v1156, 17
  %v1161 = vpop.permute.xlu0 %1160
  %1162 = vrot.lane.b32.xlu0 %v1157, 17
  %v1163 = vpop.permute.xlu0 %1162
  %1164 = vrot.lane.b32.xlu0 %v1158, 17
  %v1165 = vpop.permute.xlu0 %1164
  %1166 = vrot.lane.b32.xlu0 %v1159, 17
  %v1167 = vpop.permute.xlu0 %1166
  %v1168 = vsel %vm129, %v1165, %v1167
  %v1169 = vsel %vm129, %v1163, %v1165
  %v1170 = vsel %vm129, %v1161, %v1163
  %v1171 = vsel %vm129, %v1167, %v1161
  %v1172 = vmul.f32 %v1171, %v134
  %v1173 = vmul.f32 %v1170, %v135
  %v1174 = vmul.f32 %v1169, %v136
  %v1175 = vmul.f32 %v1168, %v137
  %1176 = vrot.lane.b32.xlu0 %v1156, 16
  %v1177 = vpop.permute.xlu0 %1176
  %1178 = vrot.lane.b32.xlu0 %v1157, 16
  %v1179 = vpop.permute.xlu0 %1178
  %1180 = vrot.lane.b32.xlu0 %v1158, 16
  %v1181 = vpop.permute.xlu0 %1180
  %1182 = vrot.lane.b32.xlu0 %v1159, 16
  %v1183 = vpop.permute.xlu0 %1182
  %v1184 = vsel %vm150, %v1181, %v1183
  %v1185 = vsel %vm150, %v1179, %v1181
  %v1186 = vsel %vm150, %v1177, %v1179
  %v1187 = vsel %vm150, %v1183, %v1177
  %v1188 = vmul.f32 %v1187, %v156
  %v1189 = vmul.f32 %v1186, %v157
  %v1190 = vmul.f32 %v1185, %v158
  %v1191 = vmul.f32 %v1184, %v159
  %1192 = vrot.lane.b32.xlu0 %v1156, 15
  %v1193 = vpop.permute.xlu0 %1192
  %1194 = vrot.lane.b32.xlu0 %v1157, 15
  %v1195 = vpop.permute.xlu0 %1194
  %1196 = vrot.lane.b32.xlu0 %v1158, 15
  %v1197 = vpop.permute.xlu0 %1196
  %1198 = vrot.lane.b32.xlu0 %v1159, 15
  %v1199 = vpop.permute.xlu0 %1198
  %v1200 = vsel %vm172, %v1197, %v1199
  %v1201 = vsel %vm172, %v1195, %v1197
  %v1202 = vsel %vm172, %v1193, %v1195
  %v1203 = vsel %vm172, %v1199, %v1193
  %v1204 = vmul.f32 %v1203, %v178
  %v1205 = vmul.f32 %v1202, %v179
  %v1206 = vmul.f32 %v1201, %v180
  %v1207 = vmul.f32 %v1200, %v181
  %1208 = vrot.lane.b32.xlu0 %v1156, 1
  %v1209 = vpop.permute.xlu0 %1208
  %1210 = vrot.lane.b32.xlu0 %v1157, 1
  %v1211 = vpop.permute.xlu0 %1210
  %1212 = vrot.lane.b32.xlu0 %v1158, 1
  %v1213 = vpop.permute.xlu0 %1212
  %1214 = vrot.lane.b32.xlu0 %v1159, 1
  %v1215 = vpop.permute.xlu0 %1214
  %v1216 = vsel %vm194, %v1213, %v1215
  %v1217 = vsel %vm194, %v1211, %v1213
  %v1218 = vsel %vm194, %v1209, %v1211
  %v1219 = vsel %vm194, %v1215, %v1209
  %v1220 = vmul.f32 %v1219, %v200
  %v1221 = vmul.f32 %v1218, %v201
  %v1222 = vmul.f32 %v1217, %v202
  %v1223 = vmul.f32 %v1216, %v203
  %1224 = vrot.lane.b32.xlu0 %v1156, 127
  %v1225 = vpop.permute.xlu0 %1224
  %1226 = vrot.lane.b32.xlu0 %v1157, 127
  %v1227 = vpop.permute.xlu0 %1226
  %1228 = vrot.lane.b32.xlu0 %v1158, 127
  %v1229 = vpop.permute.xlu0 %1228
  %1230 = vrot.lane.b32.xlu0 %v1159, 127
  %v1231 = vpop.permute.xlu0 %1230
  %v1232 = vsel %vm216, %v1229, %v1231
  %v1233 = vsel %vm216, %v1227, %v1229
  %v1234 = vsel %vm216, %v1225, %v1227
  %v1235 = vsel %vm216, %v1231, %v1225
  %v1236 = vmul.f32 %v1234, %v222
  %v1237 = vmul.f32 %v1233, %v223
  %v1238 = vmul.f32 %v1232, %v224
  %v1239 = vmul.f32 %v1235, %v225
  %1240 = vrot.lane.b32.xlu0 %v1156, 113
  %v1241 = vpop.permute.xlu0 %1240
  %1242 = vrot.lane.b32.xlu0 %v1157, 113
  %v1243 = vpop.permute.xlu0 %1242
  %1244 = vrot.lane.b32.xlu0 %v1158, 113
  %v1245 = vpop.permute.xlu0 %1244
  %1246 = vrot.lane.b32.xlu0 %v1159, 113
  %v1247 = vpop.permute.xlu0 %1246
  %v1248 = vsel %vm238, %v1245, %v1247
  %v1249 = vsel %vm238, %v1243, %v1245
  %v1250 = vsel %vm238, %v1241, %v1243
  %v1251 = vsel %vm238, %v1247, %v1241
  %v1252 = vmul.f32 %v1250, %v244
  %v1253 = vmul.f32 %v1249, %v245
  %v1254 = vmul.f32 %v1248, %v246
  %v1255 = vmul.f32 %v1251, %v247
  %1256 = vrot.lane.b32.xlu0 %v1156, 112
  %v1257 = vpop.permute.xlu0 %1256
  %1258 = vrot.lane.b32.xlu0 %v1157, 112
  %v1259 = vpop.permute.xlu0 %1258
  %1260 = vrot.lane.b32.xlu0 %v1158, 112
  %v1261 = vpop.permute.xlu0 %1260
  %1262 = vrot.lane.b32.xlu0 %v1159, 112
  %v1263 = vpop.permute.xlu0 %1262
  %v1264 = vsel %vm260, %v1261, %v1263
  %v1265 = vsel %vm260, %v1259, %v1261
  %v1266 = vsel %vm260, %v1257, %v1259
  %v1267 = vsel %vm260, %v1263, %v1257
  %v1268 = vmul.f32 %v1266, %v266
  %v1269 = vmul.f32 %v1265, %v267
  %v1270 = vmul.f32 %v1264, %v268
  %v1271 = vmul.f32 %v1267, %v269
  %1272 = vrot.lane.b32.xlu0 %v1156, 111
  %v1273 = vpop.permute.xlu0 %1272
  %1274 = vrot.lane.b32.xlu0 %v1157, 111
  %v1275 = vpop.permute.xlu0 %1274
  %1276 = vrot.lane.b32.xlu0 %v1158, 111
  %v1277 = vpop.permute.xlu0 %1276
  %1278 = vrot.lane.b32.xlu0 %v1159, 111
  %v1279 = vpop.permute.xlu0 %1278
  %v1280 = vsel %vm282, %v1277, %v1279
  %v1281 = vsel %vm282, %v1275, %v1277
  %v1282 = vsel %vm282, %v1273, %v1275
  %v1283 = vsel %vm282, %v1279, %v1273
  %v1284 = vmul.f32 %v1282, %v288
  %v1285 = vmul.f32 %v1281, %v289
  %v1286 = vmul.f32 %v1280, %v290
  %v1287 = vmul.f32 %v1283, %v291
  %v1288 = vld [vmem:[%s16] sm:$0xff]
  %v1289 = vld [vmem:[%s17] sm:$0xff]
  %1291 = vset.pattern.permute.xlu0 0
  %1292 = vperm.xlu0 %1291, %v1289
  %v1293 = vpop.permute.xlu0 %1292
  %v1296 = vsel %vm303, %v1288, 0
  %1298 = vmatprep.subr.mxu0 %v1173
  %1299 = vmatpush1.msra.mxu0 %v1172
  %1300 = vmatprep.subr.mxu0 %v1189
  %1301 = vmatpush1.msra.mxu0 %v1188
  %1302 = vmatprep.subr.mxu0 %v1205
  %1303 = vmatpush1.msra.mxu0 %v1204
  %1304 = vmatprep.subr.mxu0 %v1221
  %1305 = vmatpush1.msra.mxu0 %v1220
  %1306 = vmatprep.subr.mxu0 %v1157
  %1307 = vmatpush1.msra.mxu0 %v1156
  %1308 = vmatprep.subr.mxu0 %v1237
  %1309 = vmatpush1.msra.mxu0 %v1236
  %1310 = vmatprep.subr.mxu0 %v1253
  %1311 = vmatpush1.msra.mxu0 %v1252
  %1312 = vmatprep.subr.mxu0 %v1269
  %1313 = vmatpush1.msra.mxu0 %v1268
  %1314 = vmatprep.subr.mxu0 %v1285
  %1315 = vmatpush1.msra.mxu0 %v1284
  %1316 = vmatprep.subr.mxu0 0.0
  %1317 = vmatpush1.msra.mxu0 0.0
  %1318 = vmatprep.subr.mxu0 0.0
  %1319 = vmatpush1.msra.mxu0 0.0
  %1320 = vmatprep.subr.mxu0 0.0
  %1321 = vmatpush1.msra.mxu0 0.0
  %1322 = vmatprep.subr.mxu0 0.0
  %1323 = vmatpush1.msra.mxu0 0.0
  %1324 = vmatprep.subr.mxu0 0.0
  %1325 = vmatpush1.msra.mxu0 0.0
  %1326 = vmatprep.subr.mxu0 0.0
  %1327 = vmatpush1.msra.mxu0 0.0
  %1328 = vmatprep.subr.mxu0 0.0
  %1329 = vmatpush1.msra.mxu0 0.0
  %1330 = vmatprep.subr.mxu0 0.0
  %1331 = vmatpush1.msra.mxu0 0.0
  %1332 = vmatprep.subr.mxu0 0.0
  %1333 = vmatpush1.msra.mxu0 0.0
  %1334 = vmatprep.subr.mxu0 0.0
  %1335 = vmatpush1.msra.mxu0 0.0
  %1336 = vmatprep.subr.mxu0 0.0
  %1337 = vmatpush1.msra.mxu0 0.0
  %1338 = vmatprep.subr.mxu0 0.0
  %1339 = vmatpush1.msra.mxu0 0.0
  %1340 = vmatprep.subr.mxu0 0.0
  %1341 = vmatpush1.msra.mxu0 0.0
  %1342 = vmatprep.subr.mxu0 0.0
  %1343 = vmatpush1.msra.mxu0 0.0
  %1344 = vmatprep.subr.mxu0 0.0
  %1345 = vmatpush1.msra.mxu0 0.0
  %1346 = vmatprep.subr.mxu0 0.0
  %1347 = vmatpush1.msra.mxu0 0.0
  %1348 = vmatprep.subr.mxu0 0.0
  %1349 = vmatpush1.msra.mxu0 0.0
  %1350 = vmatprep.subr.mxu0 0.0
  %1351 = vmatpush1.msra.mxu0 0.0
  %1352 = vmatprep.subr.mxu0 0.0
  %1353 = vmatpush1.msra.mxu0 0.0
  %1354 = vmatprep.subr.mxu0 0.0
  %1355 = vmatpush1.msra.mxu0 0.0
  %1356 = vmatprep.subr.mxu0 0.0
  %1357 = vmatpush1.msra.mxu0 0.0
  %1358 = vmatprep.subr.mxu0 0.0
  %1359 = vmatpush1.msra.mxu0 0.0
  %1360 = vmatprep.subr.mxu0 0.0
  %1361 = vmatpush1.msra.mxu0 0.0
  %1362 = vmatprep.mubr.f32.mxu0 0.0
  %1363 = vmatmul.mubr.f32.gmra.mrb[0].mxu0 %v1296
  %v1364 = vpop.f32.mrb[0].mxu0
  %v1365 = vadd.f32 %v1293, %v1364
  %v1366 = vpop.f32.mrb[0].mxu0
  %v1367 = vadd.f32 %v1293, %v1366
  %1368 = vdwg.mxu0
  %1369 = vmatprep.subr.mxu0 %v1175
  %1370 = vmatpush1.msra.mxu0 %v1174
  %1371 = vmatprep.subr.mxu0 %v1191
  %1372 = vmatpush1.msra.mxu0 %v1190
  %1373 = vmatprep.subr.mxu0 %v1207
  %1374 = vmatpush1.msra.mxu0 %v1206
  %1375 = vmatprep.subr.mxu0 %v1223
  %1376 = vmatpush1.msra.mxu0 %v1222
  %1377 = vmatprep.subr.mxu0 %v1159
  %1378 = vmatpush1.msra.mxu0 %v1158
  %1379 = vmatprep.subr.mxu0 %v1239
  %1380 = vmatpush1.msra.mxu0 %v1238
  %1381 = vmatprep.subr.mxu0 %v1255
  %1382 = vmatpush1.msra.mxu0 %v1254
  %1383 = vmatprep.subr.mxu0 %v1271
  %1384 = vmatpush1.msra.mxu0 %v1270
  %1385 = vmatprep.subr.mxu0 %v1287
  %1386 = vmatpush1.msra.mxu0 %v1286
  %1387 = vmatprep.subr.mxu0 0.0
  %1388 = vmatpush1.msra.mxu0 0.0
  %1389 = vmatprep.subr.mxu0 0.0
  %1390 = vmatpush1.msra.mxu0 0.0
  %1391 = vmatprep.subr.mxu0 0.0
  %1392 = vmatpush1.msra.mxu0 0.0
  %1393 = vmatprep.subr.mxu0 0.0
  %1394 = vmatpush1.msra.mxu0 0.0
  %1395 = vmatprep.subr.mxu0 0.0
  %1396 = vmatpush1.msra.mxu0 0.0
  %1397 = vmatprep.subr.mxu0 0.0
  %1398 = vmatpush1.msra.mxu0 0.0
  %1399 = vmatprep.subr.mxu0 0.0
  %1400 = vmatpush1.msra.mxu0 0.0
  %1401 = vmatprep.subr.mxu0 0.0
  %1402 = vmatpush1.msra.mxu0 0.0
  %1403 = vmatprep.subr.mxu0 0.0
  %1404 = vmatpush1.msra.mxu0 0.0
  %1405 = vmatprep.subr.mxu0 0.0
  %1406 = vmatpush1.msra.mxu0 0.0
  %1407 = vmatprep.subr.mxu0 0.0
  %1408 = vmatpush1.msra.mxu0 0.0
  %1409 = vmatprep.subr.mxu0 0.0
  %1410 = vmatpush1.msra.mxu0 0.0
  %1411 = vmatprep.subr.mxu0 0.0
  %1412 = vmatpush1.msra.mxu0 0.0
  %1413 = vmatprep.subr.mxu0 0.0
  %1414 = vmatpush1.msra.mxu0 0.0
  %1415 = vmatprep.subr.mxu0 0.0
  %1416 = vmatpush1.msra.mxu0 0.0
  %1417 = vmatprep.subr.mxu0 0.0
  %1418 = vmatpush1.msra.mxu0 0.0
  %1419 = vmatprep.subr.mxu0 0.0
  %1420 = vmatpush1.msra.mxu0 0.0
  %1421 = vmatprep.subr.mxu0 0.0
  %1422 = vmatpush1.msra.mxu0 0.0
  %1423 = vmatprep.subr.mxu0 0.0
  %1424 = vmatpush1.msra.mxu0 0.0
  %1425 = vmatprep.subr.mxu0 0.0
  %1426 = vmatpush1.msra.mxu0 0.0
  %1427 = vmatprep.subr.mxu0 0.0
  %1428 = vmatpush1.msra.mxu0 0.0
  %1429 = vmatprep.subr.mxu0 0.0
  %1430 = vmatpush1.msra.mxu0 0.0
  %1431 = vmatprep.subr.mxu0 0.0
  %1432 = vmatpush1.msra.mxu0 0.0
  %1433 = vmatprep.mubr.f32.mxu0 0.0
  %1434 = vmatmul.mubr.f32.gmra.mrb[0].mxu0 %v1296
  %v1435 = vpop.f32.mrb[0].mxu0
  %v1436 = vadd.f32 %v1293, %v1435
  %v1437 = vpop.f32.mrb[0].mxu0
  %v1438 = vadd.f32 %v1293, %v1437
  %1439 = vdwg.mxu0
  %v1440 = vadd.f32 %v1365, %v778
  %v1441 = vadd.f32 %v1367, %v779
  %v1442 = vadd.f32 %v1436, %v780
  %v1443 = vadd.f32 %v1438, %v781
  %1444 = vrot.lane.b32.xlu0 %v1440, 17
  %v1445 = vpop.permute.xlu0 %1444
  %1446 = vrot.lane.b32.xlu0 %v1441, 17
  %v1447 = vpop.permute.xlu0 %1446
  %1448 = vrot.lane.b32.xlu0 %v1442, 17
  %v1449 = vpop.permute.xlu0 %1448
  %1450 = vrot.lane.b32.xlu0 %v1443, 17
  %v1451 = vpop.permute.xlu0 %1450
  %v1452 = vsel %vm129, %v1449, %v1451
  %v1453 = vsel %vm129, %v1447, %v1449
  %v1454 = vsel %vm129, %v1445, %v1447
  %v1455 = vsel %vm129, %v1451, %v1445
  %v1456 = vmul.f32 %v1455, %v134
  %v1457 = vmul.f32 %v1454, %v135
  %v1458 = vmul.f32 %v1453, %v136
  %v1459 = vmul.f32 %v1452, %v137
  %1460 = vrot.lane.b32.xlu0 %v1440, 16
  %v1461 = vpop.permute.xlu0 %1460
  %1462 = vrot.lane.b32.xlu0 %v1441, 16
  %v1463 = vpop.permute.xlu0 %1462
  %1464 = vrot.lane.b32.xlu0 %v1442, 16
  %v1465 = vpop.permute.xlu0 %1464
  %1466 = vrot.lane.b32.xlu0 %v1443, 16
  %v1467 = vpop.permute.xlu0 %1466
  %v1468 = vsel %vm150, %v1465, %v1467
  %v1469 = vsel %vm150, %v1463, %v1465
  %v1470 = vsel %vm150, %v1461, %v1463
  %v1471 = vsel %vm150, %v1467, %v1461
  %v1472 = vmul.f32 %v1471, %v156
  %v1473 = vmul.f32 %v1470, %v157
  %v1474 = vmul.f32 %v1469, %v158
  %v1475 = vmul.f32 %v1468, %v159
  %1476 = vrot.lane.b32.xlu0 %v1440, 15
  %v1477 = vpop.permute.xlu0 %1476
  %1478 = vrot.lane.b32.xlu0 %v1441, 15
  %v1479 = vpop.permute.xlu0 %1478
  %1480 = vrot.lane.b32.xlu0 %v1442, 15
  %v1481 = vpop.permute.xlu0 %1480
  %1482 = vrot.lane.b32.xlu0 %v1443, 15
  %v1483 = vpop.permute.xlu0 %1482
  %v1484 = vsel %vm172, %v1481, %v1483
  %v1485 = vsel %vm172, %v1479, %v1481
  %v1486 = vsel %vm172, %v1477, %v1479
  %v1487 = vsel %vm172, %v1483, %v1477
  %v1488 = vmul.f32 %v1487, %v178
  %v1489 = vmul.f32 %v1486, %v179
  %v1490 = vmul.f32 %v1485, %v180
  %v1491 = vmul.f32 %v1484, %v181
  %1492 = vrot.lane.b32.xlu0 %v1440, 1
  %v1493 = vpop.permute.xlu0 %1492
  %1494 = vrot.lane.b32.xlu0 %v1441, 1
  %v1495 = vpop.permute.xlu0 %1494
  %1496 = vrot.lane.b32.xlu0 %v1442, 1
  %v1497 = vpop.permute.xlu0 %1496
  %1498 = vrot.lane.b32.xlu0 %v1443, 1
  %v1499 = vpop.permute.xlu0 %1498
  %v1500 = vsel %vm194, %v1497, %v1499
  %v1501 = vsel %vm194, %v1495, %v1497
  %v1502 = vsel %vm194, %v1493, %v1495
  %v1503 = vsel %vm194, %v1499, %v1493
  %v1504 = vmul.f32 %v1503, %v200
  %v1505 = vmul.f32 %v1502, %v201
  %v1506 = vmul.f32 %v1501, %v202
  %v1507 = vmul.f32 %v1500, %v203
  %1508 = vrot.lane.b32.xlu0 %v1440, 127
  %v1509 = vpop.permute.xlu0 %1508
  %1510 = vrot.lane.b32.xlu0 %v1441, 127
  %v1511 = vpop.permute.xlu0 %1510
  %1512 = vrot.lane.b32.xlu0 %v1442, 127
  %v1513 = vpop.permute.xlu0 %1512
  %1514 = vrot.lane.b32.xlu0 %v1443, 127
  %v1515 = vpop.permute.xlu0 %1514
  %v1516 = vsel %vm216, %v1513, %v1515
  %v1517 = vsel %vm216, %v1511, %v1513
  %v1518 = vsel %vm216, %v1509, %v1511
  %v1519 = vsel %vm216, %v1515, %v1509
  %v1520 = vmul.f32 %v1518, %v222
  %v1521 = vmul.f32 %v1517, %v223
  %v1522 = vmul.f32 %v1516, %v224
  %v1523 = vmul.f32 %v1519, %v225
  %1524 = vrot.lane.b32.xlu0 %v1440, 113
  %v1525 = vpop.permute.xlu0 %1524
  %1526 = vrot.lane.b32.xlu0 %v1441, 113
  %v1527 = vpop.permute.xlu0 %1526
  %1528 = vrot.lane.b32.xlu0 %v1442, 113
  %v1529 = vpop.permute.xlu0 %1528
  %1530 = vrot.lane.b32.xlu0 %v1443, 113
  %v1531 = vpop.permute.xlu0 %1530
  %v1532 = vsel %vm238, %v1529, %v1531
  %v1533 = vsel %vm238, %v1527, %v1529
  %v1534 = vsel %vm238, %v1525, %v1527
  %v1535 = vsel %vm238, %v1531, %v1525
  %v1536 = vmul.f32 %v1534, %v244
  %v1537 = vmul.f32 %v1533, %v245
  %v1538 = vmul.f32 %v1532, %v246
  %v1539 = vmul.f32 %v1535, %v247
  %1540 = vrot.lane.b32.xlu0 %v1440, 112
  %v1541 = vpop.permute.xlu0 %1540
  %1542 = vrot.lane.b32.xlu0 %v1441, 112
  %v1543 = vpop.permute.xlu0 %1542
  %1544 = vrot.lane.b32.xlu0 %v1442, 112
  %v1545 = vpop.permute.xlu0 %1544
  %1546 = vrot.lane.b32.xlu0 %v1443, 112
  %v1547 = vpop.permute.xlu0 %1546
  %v1548 = vsel %vm260, %v1545, %v1547
  %v1549 = vsel %vm260, %v1543, %v1545
  %v1550 = vsel %vm260, %v1541, %v1543
  %v1551 = vsel %vm260, %v1547, %v1541
  %v1552 = vmul.f32 %v1550, %v266
  %v1553 = vmul.f32 %v1549, %v267
  %v1554 = vmul.f32 %v1548, %v268
  %v1555 = vmul.f32 %v1551, %v269
  %1556 = vrot.lane.b32.xlu0 %v1440, 111
  %v1557 = vpop.permute.xlu0 %1556
  %1558 = vrot.lane.b32.xlu0 %v1441, 111
  %v1559 = vpop.permute.xlu0 %1558
  %1560 = vrot.lane.b32.xlu0 %v1442, 111
  %v1561 = vpop.permute.xlu0 %1560
  %1562 = vrot.lane.b32.xlu0 %v1443, 111
  %v1563 = vpop.permute.xlu0 %1562
  %v1564 = vsel %vm282, %v1561, %v1563
  %v1565 = vsel %vm282, %v1559, %v1561
  %v1566 = vsel %vm282, %v1557, %v1559
  %v1567 = vsel %vm282, %v1563, %v1557
  %v1568 = vmul.f32 %v1566, %v288
  %v1569 = vmul.f32 %v1565, %v289
  %v1570 = vmul.f32 %v1564, %v290
  %v1571 = vmul.f32 %v1567, %v291
  %v1572 = vld [vmem:[%s18] sm:$0xff]
  %v1573 = vld [vmem:[%s19] sm:$0xff]
  %1575 = vset.pattern.permute.xlu0 0
  %1576 = vperm.xlu0 %1575, %v1573
  %v1577 = vpop.permute.xlu0 %1576
  %v1580 = vsel %vm303, %v1572, 0
  %1582 = vmatprep.subr.mxu0 %v1457
  %1583 = vmatpush1.msra.mxu0 %v1456
  %1584 = vmatprep.subr.mxu0 %v1473
  %1585 = vmatpush1.msra.mxu0 %v1472
  %1586 = vmatprep.subr.mxu0 %v1489
  %1587 = vmatpush1.msra.mxu0 %v1488
  %1588 = vmatprep.subr.mxu0 %v1505
  %1589 = vmatpush1.msra.mxu0 %v1504
  %1590 = vmatprep.subr.mxu0 %v1441
  %1591 = vmatpush1.msra.mxu0 %v1440
  %1592 = vmatprep.subr.mxu0 %v1521
  %1593 = vmatpush1.msra.mxu0 %v1520
  %1594 = vmatprep.subr.mxu0 %v1537
  %1595 = vmatpush1.msra.mxu0 %v1536
  %1596 = vmatprep.subr.mxu0 %v1553
  %1597 = vmatpush1.msra.mxu0 %v1552
  %1598 = vmatprep.subr.mxu0 %v1569
  %1599 = vmatpush1.msra.mxu0 %v1568
  %1600 = vmatprep.subr.mxu0 0.0
  %1601 = vmatpush1.msra.mxu0 0.0
  %1602 = vmatprep.subr.mxu0 0.0
  %1603 = vmatpush1.msra.mxu0 0.0
  %1604 = vmatprep.subr.mxu0 0.0
  %1605 = vmatpush1.msra.mxu0 0.0
  %1606 = vmatprep.subr.mxu0 0.0
  %1607 = vmatpush1.msra.mxu0 0.0
  %1608 = vmatprep.subr.mxu0 0.0
  %1609 = vmatpush1.msra.mxu0 0.0
  %1610 = vmatprep.subr.mxu0 0.0
  %1611 = vmatpush1.msra.mxu0 0.0
  %1612 = vmatprep.subr.mxu0 0.0
  %1613 = vmatpush1.msra.mxu0 0.0
  %1614 = vmatprep.subr.mxu0 0.0
  %1615 = vmatpush1.msra.mxu0 0.0
  %1616 = vmatprep.subr.mxu0 0.0
  %1617 = vmatpush1.msra.mxu0 0.0
  %1618 = vmatprep.subr.mxu0 0.0
  %1619 = vmatpush1.msra.mxu0 0.0
  %1620 = vmatprep.subr.mxu0 0.0
  %1621 = vmatpush1.msra.mxu0 0.0
  %1622 = vmatprep.subr.mxu0 0.0
  %1623 = vmatpush1.msra.mxu0 0.0
  %1624 = vmatprep.subr.mxu0 0.0
  %1625 = vmatpush1.msra.mxu0 0.0
  %1626 = vmatprep.subr.mxu0 0.0
  %1627 = vmatpush1.msra.mxu0 0.0
  %1628 = vmatprep.subr.mxu0 0.0
  %1629 = vmatpush1.msra.mxu0 0.0
  %1630 = vmatprep.subr.mxu0 0.0
  %1631 = vmatpush1.msra.mxu0 0.0
  %1632 = vmatprep.subr.mxu0 0.0
  %1633 = vmatpush1.msra.mxu0 0.0
  %1634 = vmatprep.subr.mxu0 0.0
  %1635 = vmatpush1.msra.mxu0 0.0
  %1636 = vmatprep.subr.mxu0 0.0
  %1637 = vmatpush1.msra.mxu0 0.0
  %1638 = vmatprep.subr.mxu0 0.0
  %1639 = vmatpush1.msra.mxu0 0.0
  %1640 = vmatprep.subr.mxu0 0.0
  %1641 = vmatpush1.msra.mxu0 0.0
  %1642 = vmatprep.subr.mxu0 0.0
  %1643 = vmatpush1.msra.mxu0 0.0
  %1644 = vmatprep.subr.mxu0 0.0
  %1645 = vmatpush1.msra.mxu0 0.0
  %1646 = vmatprep.mubr.f32.mxu0 0.0
  %1647 = vmatmul.mubr.f32.gmra.mrb[0].mxu0 %v1580
  %v1648 = vpop.f32.mrb[0].mxu0
  %v1649 = vadd.f32 %v1577, %v1648
  %v1650 = vpop.f32.mrb[0].mxu0
  %v1651 = vadd.f32 %v1577, %v1650
  %1652 = vdwg.mxu0
  %1653 = vmatprep.subr.mxu0 %v1459
  %1654 = vmatpush1.msra.mxu0 %v1458
  %1655 = vmatprep.subr.mxu0 %v1475
  %1656 = vmatpush1.msra.mxu0 %v1474
  %1657 = vmatprep.subr.mxu0 %v1491
  %1658 = vmatpush1.msra.mxu0 %v1490
  %1659 = vmatprep.subr.mxu0 %v1507
  %1660 = vmatpush1.msra.mxu0 %v1506
  %1661 = vmatprep.subr.mxu0 %v1443
  %1662 = vmatpush1.msra.mxu0 %v1442
  %1663 = vmatprep.subr.mxu0 %v1523
  %1664 = vmatpush1.msra.mxu0 %v1522
  %1665 = vmatprep.subr.mxu0 %v1539
  %1666 = vmatpush1.msra.mxu0 %v1538
  %1667 = vmatprep.subr.mxu0 %v1555
  %1668 = vmatpush1.msra.mxu0 %v1554
  %1669 = vmatprep.subr.mxu0 %v1571
  %1670 = vmatpush1.msra.mxu0 %v1570
  %1671 = vmatprep.subr.mxu0 0.0
  %1672 = vmatpush1.msra.mxu0 0.0
  %1673 = vmatprep.subr.mxu0 0.0
  %1674 = vmatpush1.msra.mxu0 0.0
  %1675 = vmatprep.subr.mxu0 0.0
  %1676 = vmatpush1.msra.mxu0 0.0
  %1677 = vmatprep.subr.mxu0 0.0
  %1678 = vmatpush1.msra.mxu0 0.0
  %1679 = vmatprep.subr.mxu0 0.0
  %1680 = vmatpush1.msra.mxu0 0.0
  %1681 = vmatprep.subr.mxu0 0.0
  %1682 = vmatpush1.msra.mxu0 0.0
  %1683 = vmatprep.subr.mxu0 0.0
  %1684 = vmatpush1.msra.mxu0 0.0
  %1685 = vmatprep.subr.mxu0 0.0
  %1686 = vmatpush1.msra.mxu0 0.0
  %1687 = vmatprep.subr.mxu0 0.0
  %1688 = vmatpush1.msra.mxu0 0.0
  %1689 = vmatprep.subr.mxu0 0.0
  %1690 = vmatpush1.msra.mxu0 0.0
  %1691 = vmatprep.subr.mxu0 0.0
  %1692 = vmatpush1.msra.mxu0 0.0
  %1693 = vmatprep.subr.mxu0 0.0
  %1694 = vmatpush1.msra.mxu0 0.0
  %1695 = vmatprep.subr.mxu0 0.0
  %1696 = vmatpush1.msra.mxu0 0.0
  %1697 = vmatprep.subr.mxu0 0.0
  %1698 = vmatpush1.msra.mxu0 0.0
  %1699 = vmatprep.subr.mxu0 0.0
  %1700 = vmatpush1.msra.mxu0 0.0
  %1701 = vmatprep.subr.mxu0 0.0
  %1702 = vmatpush1.msra.mxu0 0.0
  %1703 = vmatprep.subr.mxu0 0.0
  %1704 = vmatpush1.msra.mxu0 0.0
  %1705 = vmatprep.subr.mxu0 0.0
  %1706 = vmatpush1.msra.mxu0 0.0
  %1707 = vmatprep.subr.mxu0 0.0
  %1708 = vmatpush1.msra.mxu0 0.0
  %1709 = vmatprep.subr.mxu0 0.0
  %1710 = vmatpush1.msra.mxu0 0.0
  %1711 = vmatprep.subr.mxu0 0.0
  %1712 = vmatpush1.msra.mxu0 0.0
  %1713 = vmatprep.subr.mxu0 0.0
  %1714 = vmatpush1.msra.mxu0 0.0
  %1715 = vmatprep.subr.mxu0 0.0
  %1716 = vmatpush1.msra.mxu0 0.0
  %1717 = vmatprep.mubr.f32.mxu0 0.0
  %1718 = vmatmul.mubr.f32.gmra.mrb[0].mxu0 %v1580
  %v1719 = vpop.f32.mrb[0].mxu0
  %v1720 = vadd.f32 %v1577, %v1719
  %v1721 = vpop.f32.mrb[0].mxu0
  %v1722 = vadd.f32 %v1577, %v1721
  %1723 = vdwg.mxu0
  %1724 = vst [vmem:[%s20] sm:$0xff] %v1649
  %1725 = vst [vmem:[%s20 + $0x8] sm:$0xff] %v1651
  %1726 = vst [vmem:[%s20 + $0x10] sm:$0xff] %v1720
  %1727 = vst [vmem:[%s20 + $0x18] sm:$0xff] %v1722
  // Predicated region
  $region82: #{rblock_forward.1} parent=0 // pred_check
    _
  $region83: #{rblock_forward.1} parent=0 // pred_check_branch
    %1729 = sbr.rel (0) target = $region85
  $region84: #{rblock_forward.1} parent=0 // pred_region
    _
  $region85: #{rblock_forward.1} parent=0 // pred_fallthru
    _
  // Predicated region
  $region86: #{rblock_forward.1} parent=0 // pred_check
    _
  $region87: #{rblock_forward.1} parent=0 // pred_check_branch
    %1731 = sbr.rel (0) target = $region89
  $region88: #{rblock_forward.1} parent=0 // pred_region
    _
  $region89: #{rblock_forward.1} parent=0 // pred_fallthru
    _

</llo_original>
